<compile_context>
chip_gen: v6e
topology: v6e:2x2x1
jax: 0.10.0
libtpu: 0.0.40
codegen_flags: <defaults>
</compile_context>

<pallas_src>
import functools

import jax
import jax.numpy as jnp
from jax import lax
from jax.experimental import pallas as pl
from jax.experimental.pallas import tpu as pltpu


def _round_up(x, m):
    return (x + m - 1) // m * m


# ---------------------------------------------------------------------------
# Pallas kernel: in-kernel im2col (K = 9*Cin) -> single MXU matmul + bias+ReLU
# ---------------------------------------------------------------------------
def _repvgg_block_kernel(x_ref, w_ref, b_ref, o_ref, *, stride):
    """One (batch, row-tile) grid step of ReLU(conv3x3(x) + b).

    x_ref: (s*s, Hph, Wph, Cin)  phase-split, zero-padded NHWC input (bf16)
    w_ref: (9*Cin, Cpad)         fused kernel, K ordered (dy, dx, cin) (bf16)
    b_ref: (1, Cpad)             fused bias                            (f32)
    o_ref: (1, TH, Wop, Cpad)    output row tile                       (bf16)
    """
    s = stride
    _, th, wop, cpad = o_ref.shape
    cin = x_ref.shape[-1]
    row0 = pl.program_id(1) * th

    # Gather the 9 tap slabs (each a contiguous window of one phase image) and
    # fold them into the contraction dim: LHS = (th*wop, 9*cin).
    slabs = []
    for dy in range(3):
        py, oy = dy % s, dy // s
        for dx in range(3):
            px, ox = dx % s, dx // s
            slabs.append(
                x_ref[py * s + px, pl.ds(row0 + oy, th), pl.ds(ox, wop), :])
    lhs = jnp.concatenate(slabs, axis=-1).reshape(th * wop, 9 * cin)

    # Single matmul: the MXU accumulates over all 9 taps * Cin internally.
    acc = jnp.dot(lhs, w_ref[...], preferred_element_type=jnp.float32)
    out = jnp.maximum(acc + b_ref[...], 0.0)
    o_ref[0] = out.reshape(th, wop, cpad).astype(o_ref.dtype)


def repvgg_block_apply(x_nhwc, w_eq, b_eq, stride, *, target_rows=256):
    """Apply one fused RepVGG block.  NHWC bf16 in -> NHWC bf16 out.

    x_nhwc : (N, H, W, C_phys) with C_phys >= Cin (carried channel padding).
    w_eq   : (Cout, Cin, 3, 3) PyTorch-layout fused kernel, b_eq: (Cout,).
    Returns (N, Ho, Wo, Cpad) with Cpad = round_up(Cout, 128); channels
    [Cout:Cpad] are exactly zero (zero weights + zero bias -> ReLU(0) = 0),
    so the padding can be carried into the next block for free.
    """
    s = int(stride)
    N, H, W, _ = x_nhwc.shape
    Cout, Cin = int(w_eq.shape[0]), int(w_eq.shape[1])
    Ho = (H + 2 - 3) // s + 1
    Wo = (W + 2 - 3) // s + 1

    # ---- tiling / padding ---------------------------------------------------
    Wop = _round_up(Wo, 8)                       # sublane-aligned output width
    Cpad = _round_up(Cout, 128)                  # lane-dense output channels
    th = max(1, min(Ho, target_rows // Wop))     # <= ~256 matmul rows per step
    n_row_tiles = pl.cdiv(Ho, th)
    Ho_pad = n_row_tiles * th
    k = 2 // s                                   # in-phase halo (2 if s=1, 1 if s=2)
    Hph, Wph = Ho_pad + k, Wop + k               # per-phase padded extents

    # ---- activation: drop carried channel pad, zero-pad, phase split --------
    # (channel slice + pad + reshape + transpose fuse into one XLA copy; the
    #  activation is read once per block, no HBM im2col.)
    x = x_nhwc[..., :Cin].astype(jnp.bfloat16)
    hp_tot, wp_tot = s * Hph, s * Wph
    xp = jnp.pad(x, ((0, 0), (1, hp_tot - H - 1), (1, wp_tot - W - 1), (0, 0)))
    xph = (xp.reshape(N, Hph, s, Wph, s, Cin)
             .transpose(0, 2, 4, 1, 3, 5)
             .reshape(N * s * s, Hph, Wph, Cin))

    # ---- weights: (Cout,Cin,3,3) -> (9*Cin, Cpad) bf16, K ordered (dy,dx,cin)
    w = jnp.transpose(w_eq, (2, 3, 1, 0)).reshape(9 * Cin, Cout)
    w = jnp.pad(w, ((0, 0), (0, Cpad - Cout))).astype(jnp.bfloat16)
    b = jnp.pad(b_eq, (0, Cpad - Cout)).reshape(1, Cpad).astype(jnp.float32)

    # ---- VMEM budget + advisory cost ----------------------------------------
    in_blk = s * s * Hph * Wph * Cin * 2
    out_blk = th * Wop * Cpad * 2
    w_bytes = 9 * Cin * Cpad * 2 + Cpad * 4
    live = th * Wop * 9 * Cin * 2 + th * Wop * Cpad * 4     # LHS + f32 result
    est = 2 * (in_blk + out_blk + w_bytes) + live            # double-buffered
    vmem_limit = int(min(max(2 * est + (8 << 20), 32 << 20), 96 << 20))
    cost = pl.CostEstimate(
        flops=2 * N * Ho_pad * Wop * 9 * Cin * Cpad,
        transcendentals=0,
        bytes_accessed=(xph.size * 2 + w.size * 2 + b.size * 4
                        + N * Ho_pad * Wop * Cpad * 2))

    kernel = functools.partial(_repvgg_block_kernel, stride=s)
    out = pl.pallas_call(
        kernel,
        out_shape=jax.ShapeDtypeStruct((N, Ho_pad, Wop, Cpad), jnp.bfloat16),
        grid=(N, n_row_tiles),
        in_specs=[
            # whole phase-split image of batch n; block index is invariant
            # along the row-tile axis -> DMA'd once per batch element.
            pl.BlockSpec((s * s, Hph, Wph, Cin), lambda n, i: (n, 0, 0, 0)),
            pl.BlockSpec((9 * Cin, Cpad), lambda n, i: (0, 0)),
            pl.BlockSpec((1, Cpad), lambda n, i: (0, 0)),
        ],
        out_specs=pl.BlockSpec((1, th, Wop, Cpad), lambda n, i: (n, i, 0, 0)),
        compiler_params=pltpu.CompilerParams(
            # batch axis feeds megacore sharding; row tiles stay on one core so
            # the per-image phase block is DMA'd once per core.
            dimension_semantics=("parallel", "arbitrary"),
            vmem_limit_bytes=vmem_limit),
        cost_estimate=cost,
    )(xph, w, b)

    # drop row/col padding only; zero channel padding is carried forward.
    return out[:, :Ho, :Wo, :]


# ---------------------------------------------------------------------------
# Deterministic parameter construction + RepVGG branch fusion (plain-JAX glue)
# ---------------------------------------------------------------------------
_EPS = 1e-5


def _bn_params(key, c):
    k1, k2, k3, k4 = jax.random.split(key, 4)
    gamma = 1.0 + 0.1 * jax.random.normal(k1, (c,), jnp.float32)
    beta = 0.1 * jax.random.normal(k2, (c,), jnp.float32)
    mean = 0.1 * jax.random.normal(k3, (c,), jnp.float32)
    var = jax.random.uniform(k4, (c,), jnp.float32, minval=0.5, maxval=1.5)
    return gamma, beta, mean, var


def _fuse_conv_bn(kernel, gamma, beta, mean, var, eps=_EPS):
    std = jnp.sqrt(var + eps)
    t = (gamma / std).reshape(-1, 1, 1, 1)
    return kernel * t, beta - mean * gamma / std


def make_block_params(key, cin, cout, stride):
    """Fused equivalent 3x3 kernel/bias of one RepVGGBlock (groups=1)."""
    k3w, k3bn, k1w, k1bn, kidbn = jax.random.split(key, 5)
    w3 = 0.1 * jax.random.normal(k3w, (cout, cin, 3, 3), jnp.float32)
    w1 = 0.1 * jax.random.normal(k1w, (cout, cin, 1, 1), jnp.float32)

    w3f, b3f = _fuse_conv_bn(w3, *_bn_params(k3bn, cout))
    w1f, b1f = _fuse_conv_bn(w1, *_bn_params(k1bn, cout))
    w1f = jnp.pad(w1f, ((0, 0), (0, 0), (1, 1), (1, 1)))   # 1x1 -> center of 3x3

    w_eq = w3f + w1f
    b_eq = b3f + b1f

    if cin == cout and stride == 1:                          # rbr_identity branch
        idx = jnp.arange(cin)
        id_kernel = jnp.zeros((cin, cin, 3, 3), jnp.float32).at[idx, idx, 1, 1].set(1.0)
        widf, bidf = _fuse_conv_bn(id_kernel, *_bn_params(kidbn, cin))
        w_eq = w_eq + widf
        b_eq = b_eq + bidf

    return {"w": w_eq, "b": b_eq, "stride": stride}


def init_repvgg_params(key, num_blocks, width_multiplier):
    assert len(width_multiplier) == 5
    in_planes = min(64, int(64 * width_multiplier[0]))
    blocks = []

    key, k = jax.random.split(key)
    blocks.append(make_block_params(k, 3, in_planes, 1))     # stage0
    cur_in = in_planes

    stage_widths = [int(64 * width_multiplier[1]), int(128 * width_multiplier[2]),
                    int(256 * width_multiplier[3]), int(512 * width_multiplier[4])]
    for planes, nb in zip(stage_widths, num_blocks):
        strides = [2] + [1] * (nb - 1)
        for s in strides:
            key, k = jax.random.split(key)
            blocks.append(make_block_params(k, cur_in, planes, s))
            cur_in = planes
    return blocks


# ---------------------------------------------------------------------------
# Forward (Pallas path) and a precision-matched pure-JAX reference
# ---------------------------------------------------------------------------
def repvgg_forward(x_nchw, blocks):
    x = jnp.transpose(x_nchw, (0, 2, 3, 1)).astype(jnp.bfloat16)  # NCHW->NHWC once
    layers_result = []
    for blk in blocks:
        x = repvgg_block_apply(x, blk["w"], blk["b"], blk["stride"])
        cout = blk["w"].shape[0]
        # Module contract: every returned feature map is NCHW / f32.  The
        # :cout channel slice is folded into this transpose copy.
        layers_result.append(
            jnp.transpose(x[..., :cout], (0, 3, 1, 2)).astype(jnp.float32))
    return layers_result[-1], layers_result


def repvgg_forward_ref(x_nchw, blocks):
    """Reference with the same precision policy (bf16 inputs, f32 accumulate)."""
    x = x_nchw.astype(jnp.bfloat16)
    layers = []
    for blk in blocks:
        s = blk["stride"]
        y = lax.conv_general_dilated(
            x, blk["w"].astype(jnp.bfloat16),
            window_strides=(s, s), padding=((1, 1), (1, 1)),
            dimension_numbers=("NCHW", "OIHW", "NCHW"),
            preferred_element_type=jnp.float32,
            precision=lax.Precision.HIGHEST)
        y = jnp.maximum(y + blk["b"].reshape(1, -1, 1, 1), 0.0)
        x = y.astype(jnp.bfloat16)
        layers.append(x.astype(jnp.float32))
    return layers[-1], layers


# ---------------------------------------------------------------------------
# Impulse-input test: pins the 3x3 tap / stride-phase geometry exactly.
# All values are small integers (exact in bf16), so the comparison is exact.
# ---------------------------------------------------------------------------
def _impulse_check(stride):
    cin, cout = 5, 7
    H, W = 11, 14
    x = jnp.zeros((1, H, W, cin), jnp.float32)
    for (r, c, ch) in [(0, 0, 0), (3, 4, 2), (6, 9, 1), (H - 1, W - 1, cin - 1)]:
        x = x.at[0, r, c, ch].set(1.0)
    w = ((jnp.arange(cout * cin * 9, dtype=jnp.float32)
            .reshape(cout, cin, 3, 3) % 7.0) - 3.0)
    b = (jnp.arange(cout, dtype=jnp.float32) % 5.0) - 2.0

    got = repvgg_block_apply(x.astype(jnp.bfloat16), w, b, stride)
    got = got[..., :cout].astype(jnp.float32)                       # NHWC
    ref = lax.conv_general_dilated(
        jnp.transpose(x, (0, 3, 1, 2)), w,
        window_strides=(stride, stride), padding=((1, 1), (1, 1)),
        dimension_numbers=("NCHW", "OIHW", "NCHW"),
        preferred_element_type=jnp.float32,
        precision=lax.Precision.HIGHEST)
    ref = jnp.maximum(ref + b.reshape(1, -1, 1, 1), 0.0)
    ref = jnp.transpose(ref, (0, 2, 3, 1))
    assert got.shape == ref.shape, (got.shape, ref.shape)
    assert jnp.allclose(got, ref, atol=1e-3, rtol=0.0), \
        f"impulse-geometry mismatch for stride={stride}"


# ---------------------------------------------------------------------------
if __name__ == "__main__":
    # tap / stride-phase geometry checks
    for s in (1, 2):
        _impulse_check(s)

    key = jax.random.PRNGKey(0)
    kx, kp = jax.random.split(key)

    # Small RepVGG: num_blocks=[2,1,1,1], width_multiplier=[0.25]*5
    #   -> channel widths: 16 (stage0), 16, 32, 64, 128; 6 blocks total.
    num_blocks = [2, 1, 1, 1]
    width_multiplier = [0.25, 0.25, 0.25, 0.25, 0.25]

    x = jax.random.normal(kx, (2, 3, 32, 32), jnp.float32)   # NCHW like PyTorch
    params = init_repvgg_params(kp, num_blocks, width_multiplier)

    fwd = jax.jit(lambda inp: repvgg_forward(inp, params))
    out, layers_result = fwd(x)
    jax.block_until_ready(out)
    for l in layers_result:
        jax.block_until_ready(l)

    # correctness check against the precision-matched pure-JAX reference
    ref_out, ref_layers = repvgg_forward_ref(x, params)
    assert out.shape == ref_out.shape, (out.shape, ref_out.shape)
    for a, b in zip(layers_result, ref_layers):
        assert a.shape == b.shape, (a.shape, b.shape)
        assert jnp.allclose(a, b, rtol=1e-2, atol=1e-2), "mismatch vs reference"

    print("KERNEL_OK")
</pallas_src>

<mosaic_0001>
module attributes {stable_mosaic.version = 11 : i64} {
  func.func @_repvgg_block_kernel(%arg0: i32, %arg1: i32, %arg2: memref<1x13x18x5xbf16, #tpu.memory_space<vmem>>, %arg3: memref<45x128xbf16, #tpu.memory_space<vmem>>, %arg4: memref<1x128xf32, #tpu.memory_space<vmem>>, %arg5: memref<1x11x16x128xbf16, #tpu.memory_space<vmem>>) attributes {dimension_semantics = [#tpu.dimension_semantics<parallel>, #tpu.dimension_semantics<arbitrary>], iteration_bounds = array<i64: 1, 1>, scalar_prefetch = 0 : i64, scratch_operands = 0 : i64, tpu.core_type = #tpu.core_type<tc>, window_params = [{transform_indices = @transform_0, window_bounds = array<i64: 1, 13, 18, 5>}, {pipeline_mode = #tpu.pipeline_mode<synchronous>, transform_indices = @transform_1, window_bounds = array<i64: 45, 128>}, {pipeline_mode = #tpu.pipeline_mode<synchronous>, transform_indices = @transform_2, window_bounds = array<i64: 1, 128>}, {transform_indices = @transform_3, window_bounds = array<i64: 1, 11, 16, 128>}]} {
    %c11_i32 = arith.constant 11 : i32
    %0 = arith.muli %arg1, %c11_i32 : i32
    %c0_i32 = arith.constant 0 : i32
    %1 = arith.addi %0, %c0_i32 : i32
    %c0 = arith.constant 0 : index
    %2 = arith.index_cast %1 : i32 to index
    %c0_0 = arith.constant 0 : index
    %c0_1 = arith.constant 0 : index
    %3 = vector.load %arg2[%c0, %2, %c0_0, %c0_1] : memref<1x13x18x5xbf16, #tpu.memory_space<vmem>>, vector<1x11x16x5xbf16>
    %4 = vector.shape_cast %3 : vector<1x11x16x5xbf16> to vector<11x16x5xbf16>
    %c0_i32_2 = arith.constant 0 : i32
    %5 = arith.addi %0, %c0_i32_2 : i32
    %c0_3 = arith.constant 0 : index
    %6 = arith.index_cast %5 : i32 to index
    %c1 = arith.constant 1 : index
    %c0_4 = arith.constant 0 : index
    %7 = vector.load %arg2[%c0_3, %6, %c1, %c0_4] : memref<1x13x18x5xbf16, #tpu.memory_space<vmem>>, vector<1x11x16x5xbf16>
    %8 = vector.shape_cast %7 : vector<1x11x16x5xbf16> to vector<11x16x5xbf16>
    %c0_i32_5 = arith.constant 0 : i32
    %9 = arith.addi %0, %c0_i32_5 : i32
    %c0_6 = arith.constant 0 : index
    %10 = arith.index_cast %9 : i32 to index
    %c2 = arith.constant 2 : index
    %c0_7 = arith.constant 0 : index
    %11 = vector.load %arg2[%c0_6, %10, %c2, %c0_7] : memref<1x13x18x5xbf16, #tpu.memory_space<vmem>>, vector<1x11x16x5xbf16>
    %12 = vector.shape_cast %11 : vector<1x11x16x5xbf16> to vector<11x16x5xbf16>
    %c1_i32 = arith.constant 1 : i32
    %13 = arith.addi %0, %c1_i32 : i32
    %c0_8 = arith.constant 0 : index
    %14 = arith.index_cast %13 : i32 to index
    %c0_9 = arith.constant 0 : index
    %c0_10 = arith.constant 0 : index
    %15 = vector.load %arg2[%c0_8, %14, %c0_9, %c0_10] : memref<1x13x18x5xbf16, #tpu.memory_space<vmem>>, vector<1x11x16x5xbf16>
    %16 = vector.shape_cast %15 : vector<1x11x16x5xbf16> to vector<11x16x5xbf16>
    %c1_i32_11 = arith.constant 1 : i32
    %17 = arith.addi %0, %c1_i32_11 : i32
    %c0_12 = arith.constant 0 : index
    %18 = arith.index_cast %17 : i32 to index
    %c1_13 = arith.constant 1 : index
    %c0_14 = arith.constant 0 : index
    %19 = vector.load %arg2[%c0_12, %18, %c1_13, %c0_14] : memref<1x13x18x5xbf16, #tpu.memory_space<vmem>>, vector<1x11x16x5xbf16>
    %20 = vector.shape_cast %19 : vector<1x11x16x5xbf16> to vector<11x16x5xbf16>
    %c1_i32_15 = arith.constant 1 : i32
    %21 = arith.addi %0, %c1_i32_15 : i32
    %c0_16 = arith.constant 0 : index
    %22 = arith.index_cast %21 : i32 to index
    %c2_17 = arith.constant 2 : index
    %c0_18 = arith.constant 0 : index
    %23 = vector.load %arg2[%c0_16, %22, %c2_17, %c0_18] : memref<1x13x18x5xbf16, #tpu.memory_space<vmem>>, vector<1x11x16x5xbf16>
    %24 = vector.shape_cast %23 : vector<1x11x16x5xbf16> to vector<11x16x5xbf16>
    %c2_i32 = arith.constant 2 : i32
    %25 = arith.addi %0, %c2_i32 : i32
    %c0_19 = arith.constant 0 : index
    %26 = arith.index_cast %25 : i32 to index
    %c0_20 = arith.constant 0 : index
    %c0_21 = arith.constant 0 : index
    %27 = vector.load %arg2[%c0_19, %26, %c0_20, %c0_21] : memref<1x13x18x5xbf16, #tpu.memory_space<vmem>>, vector<1x11x16x5xbf16>
    %28 = vector.shape_cast %27 : vector<1x11x16x5xbf16> to vector<11x16x5xbf16>
    %c2_i32_22 = arith.constant 2 : i32
    %29 = arith.addi %0, %c2_i32_22 : i32
    %c0_23 = arith.constant 0 : index
    %30 = arith.index_cast %29 : i32 to index
    %c1_24 = arith.constant 1 : index
    %c0_25 = arith.constant 0 : index
    %31 = vector.load %arg2[%c0_23, %30, %c1_24, %c0_25] : memref<1x13x18x5xbf16, #tpu.memory_space<vmem>>, vector<1x11x16x5xbf16>
    %32 = vector.shape_cast %31 : vector<1x11x16x5xbf16> to vector<11x16x5xbf16>
    %c2_i32_26 = arith.constant 2 : i32
    %33 = arith.addi %0, %c2_i32_26 : i32
    %c0_27 = arith.constant 0 : index
    %34 = arith.index_cast %33 : i32 to index
    %c2_28 = arith.constant 2 : index
    %c0_29 = arith.constant 0 : index
    %35 = vector.load %arg2[%c0_27, %34, %c2_28, %c0_29] : memref<1x13x18x5xbf16, #tpu.memory_space<vmem>>, vector<1x11x16x5xbf16>
    %36 = vector.shape_cast %35 : vector<1x11x16x5xbf16> to vector<11x16x5xbf16>
    %37 = tpu.concatenate %4, %8, %12, %16, %20, %24, %28, %32, %36 in 2 : vector<11x16x5xbf16>, vector<11x16x5xbf16>, vector<11x16x5xbf16>, vector<11x16x5xbf16>, vector<11x16x5xbf16>, vector<11x16x5xbf16>, vector<11x16x5xbf16>, vector<11x16x5xbf16>, vector<11x16x5xbf16> -> vector<11x16x45xbf16>
    %38 = vector.shape_cast %37 : vector<11x16x45xbf16> to vector<176x45xbf16>
    %c0_30 = arith.constant 0 : index
    %c0_31 = arith.constant 0 : index
    %39 = vector.load %arg3[%c0_30, %c0_31] : memref<45x128xbf16, #tpu.memory_space<vmem>>, vector<45x128xbf16>
    %cst = arith.constant dense<0.000000e+00> : vector<176x128xf32>
    %40 = tpu.matmul %38, %39, %cst {dimension_numbers = #tpu.dot_dimension_numbers<[1], [0], [0], [1], [0, 0, 1, 1], [], []>} : vector<176x45xbf16>, vector<45x128xbf16>, vector<176x128xf32> -> vector<176x128xf32>
    %c0_32 = arith.constant 0 : index
    %c0_33 = arith.constant 0 : index
    %41 = vector.load %arg4[%c0_32, %c0_33] : memref<1x128xf32, #tpu.memory_space<vmem>>, vector<1x128xf32>
    %42 = vector.broadcast %41 : vector<1x128xf32> to vector<176x128xf32>
    %43 = arith.addf %40, %42 : vector<176x128xf32>
    %cst_34 = arith.constant 0.000000e+00 : f32
    %44 = vector.broadcast %cst_34 : f32 to vector<176x128xf32>
    %45 = arith.maximumf %43, %44 : vector<176x128xf32>
    %46 = vector.shape_cast %45 : vector<176x128xf32> to vector<11x16x128xf32>
    %47 = arith.truncf %46 : vector<11x16x128xf32> to vector<11x16x128xbf16>
    %c0_35 = arith.constant 0 : index
    %c0_36 = arith.constant 0 : index
    %c0_37 = arith.constant 0 : index
    %c0_38 = arith.constant 0 : index
    %48 = vector.load %arg5[%c0_35, %c0_36, %c0_37, %c0_38] : memref<1x11x16x128xbf16, #tpu.memory_space<vmem>>, vector<1x11x16x128xbf16>
    %49 = vector.shape_cast %48 : vector<1x11x16x128xbf16> to vector<11x16x128xbf16>
    %50 = vector.shape_cast %47 : vector<11x16x128xbf16> to vector<1x11x16x128xbf16>
    tpu.vector_store %arg5[%c0_35, %c0_36, %c0_37, %c0_38], %50 {strides = array<i32>} : memref<1x11x16x128xbf16, #tpu.memory_space<vmem>>, vector<1x11x16x128xbf16>,
    return
  }
  func.func @transform_0(%arg0: i32, %arg1: i32) -> (i32, i32, i32, i32) {
    %c0_i32 = arith.constant 0 : i32
    %c0_i32_0 = arith.constant 0 : i32
    %c0_i32_1 = arith.constant 0 : i32
    %c0_i32_2 = arith.constant 0 : i32
    return %arg0, %c0_i32, %c0_i32_0, %c0_i32_1 : i32, i32, i32, i32
  }
  func.func @transform_1(%arg0: i32, %arg1: i32) -> (i32, i32) {
    %c0_i32 = arith.constant 0 : i32
    %c0_i32_0 = arith.constant 0 : i32
    %c0_i32_1 = arith.constant 0 : i32
    return %c0_i32, %c0_i32_0 : i32, i32
  }
  func.func @transform_2(%arg0: i32, %arg1: i32) -> (i32, i32) {
    %c0_i32 = arith.constant 0 : i32
    %c0_i32_0 = arith.constant 0 : i32
    %c0_i32_1 = arith.constant 0 : i32
    return %c0_i32, %c0_i32_0 : i32, i32
  }
  func.func @transform_3(%arg0: i32, %arg1: i32) -> (i32, i32, i32, i32) {
    %c0_i32 = arith.constant 0 : i32
    %c0_i32_0 = arith.constant 0 : i32
    %c0_i32_1 = arith.constant 0 : i32
    return %arg0, %arg1, %c0_i32, %c0_i32_0 : i32, i32, i32, i32
  }
}

</mosaic_0001>

<llo_original>
// kernel: tpu_custom_call.1
$region0: #{tpu_custom_call.1}
  #allocation0 [shape = 'u32[]', space=smem, size = 0x4, offset = 0x4, fixed_abs, tag = 'smem constant byte address 0x4 - core index']
  #allocation1 [shape = 'u32[144,128]{1,0:T(1,128)}', space=vmem, size = 0x12000, scoped, tag = 'internal scratch']
  %s0 = inlined_call_operand.vmem [shape: bf16[1,13,18,5], index: 0, kind: input, shape index: {}]
  %s1 = inlined_call_operand.vmem [shape: bf16[45,128], index: 1, kind: input, shape index: {}]
  %s2 = inlined_call_operand.vmem [shape: f32[1,128], index: 2, kind: input, shape index: {}]
  %s3 = inlined_call_operand.hbm [shape: bf16[1,11,16,128], index: 3, kind: output, shape index: {}]
  %s4 = sld [smem:[#allocation0]]
  $region22: #{tpu_custom_call.1} parent=0
    _
  %s6 = ssub.s32 1, %s4
  %s7 = scalar_select 0, %s6, %s4
  $region1: #{tpu_custom_call.1} parent=0
    #allocation2 [shape = 'u8[45056]{0}', space=vmem, size = 0xb000, scoped, tag = 'output window, operand 0, single buffered']
    #allocation3 [shape = 's32[1]{0}', space=sflag, size = 0x4, scoped, tag = 'scoped memory for tpu_custom_call.1']
    %8 = vsyncpa [#allocation3], 0
    // Predicated region
    $region2: #{tpu_custom_call.1} parent=1 // pred_check
      _
    $region3: #{tpu_custom_call.1} parent=1 // pred_check_branch
      %10 = sbr.rel (0) target = $region5
    $region4: #{tpu_custom_call.1} parent=1 // pred_region
      _
    $region5: #{tpu_custom_call.1} parent=1 // pred_fallthru
      _
    // Predicated region
    $region6: #{tpu_custom_call.1} parent=1 // pred_check
      _
    $region7: #{tpu_custom_call.1} parent=1 // pred_check_branch
      %12 = sbr.rel (0) target = $region9
    $region8: #{tpu_custom_call.1} parent=1 // pred_region
      _
    $region9: #{tpu_custom_call.1} parent=1 // pred_fallthru
      _
    // Predicated region
    $region10: #{tpu_custom_call.1} parent=1 // pred_check
      _
    $region11: #{tpu_custom_call.1} parent=1 // pred_check_branch
      %14 = sbr.rel (0) target = $region13
    $region12: #{tpu_custom_call.1} parent=1 // pred_region
      _
    $region13: #{tpu_custom_call.1} parent=1 // pred_fallthru
      _
    %s16 = smul.u32 0, 11
    %s17 = smul.u32 %s16, 3
    %s18 = smul.addr %s17, 4
    %s19 = scalar_lea.vmem %s0, %s18
    %v20 = vld [vmem:[%s19] sm:$0xf]
    %v21 = vld [vmem:[%s19 + $0x4] sm:$0xf]
    %v22 = vld [vmem:[%s19 + $0xc] sm:$0xf]
    %v23 = vld [vmem:[%s19 + $0x10] sm:$0xf]
    %v24 = vld [vmem:[%s19 + $0x18] sm:$0xf]
    %v25 = vld [vmem:[%s19 + $0x1c] sm:$0xf]
    %v26 = vld [vmem:[%s19 + $0x24] sm:$0xf]
    %v27 = vld [vmem:[%s19 + $0x28] sm:$0xf]
    %v28 = vld [vmem:[%s19 + $0x30] sm:$0xf]
    %v29 = vld [vmem:[%s19 + $0x34] sm:$0xf]
    %v30 = vld [vmem:[%s19 + $0x3c] sm:$0xf]
    %v31 = vld [vmem:[%s19 + $0x40] sm:$0xf]
    %v32 = vld [vmem:[%s19 + $0x48] sm:$0xf]
    %v33 = vld [vmem:[%s19 + $0x4c] sm:$0xf]
    %v34 = vld [vmem:[%s19 + $0x54] sm:$0xf]
    %v35 = vld [vmem:[%s19 + $0x58] sm:$0xf]
    %v36 = vld [vmem:[%s19 + $0x60] sm:$0xf]
    %v37 = vld [vmem:[%s19 + $0x64] sm:$0xf]
    %v38 = vld [vmem:[%s19 + $0x6c] sm:$0xf]
    %v39 = vld [vmem:[%s19 + $0x70] sm:$0xf]
    %v40 = vld [vmem:[%s19 + $0x78] sm:$0xf]
    %v41 = vld [vmem:[%s19 + $0x7c] sm:$0xf]
    %v42 = vld [vmem:[%s19 + $0x8] sm:$0x1]
    %v43 = vld [vmem:[%s19 + $0x14] sm:$0x1]
    %v44 = vld [vmem:[%s19 + $0x20] sm:$0x1]
    %v45 = vld [vmem:[%s19 + $0x2c] sm:$0x1]
    %v46 = vld [vmem:[%s19 + $0x38] sm:$0x1]
    %v47 = vld [vmem:[%s19 + $0x44] sm:$0x1]
    %v48 = vld [vmem:[%s19 + $0x50] sm:$0x1]
    %v49 = vld [vmem:[%s19 + $0x5c] sm:$0x1]
    %v50 = vld [vmem:[%s19 + $0x68] sm:$0x1]
    %v51 = vld [vmem:[%s19 + $0x74] sm:$0x1]
    %v52 = vld [vmem:[%s19 + $0x80] sm:$0x1]
    %v53 = vld [vmem:[%s19] sm:$0xe]
    %v54 = vld [vmem:[%s19 + $0xc] sm:$0xe]
    %v55 = vld [vmem:[%s19 + $0x18] sm:$0xe]
    %v56 = vld [vmem:[%s19 + $0x24] sm:$0xe]
    %v57 = vld [vmem:[%s19 + $0x30] sm:$0xe]
    %v58 = vld [vmem:[%s19 + $0x3c] sm:$0xe]
    %v59 = vld [vmem:[%s19 + $0x48] sm:$0xe]
    %v60 = vld [vmem:[%s19 + $0x54] sm:$0xe]
    %v61 = vld [vmem:[%s19 + $0x60] sm:$0xe]
    %v62 = vld [vmem:[%s19 + $0x6c] sm:$0xe]
    %v63 = vld [vmem:[%s19 + $0x78] sm:$0xe]
    %s64 = sadd.s32 %s16, 1
    %s65 = smul.u32 %s64, 3
    %s66 = smul.addr %s65, 4
    %s67 = scalar_lea.vmem %s0, %s66
    %v68 = vld [vmem:[%s67] sm:$0xf]
    %v69 = vld [vmem:[%s67 + $0x4] sm:$0xf]
    %v70 = vld [vmem:[%s67 + $0xc] sm:$0xf]
    %v71 = vld [vmem:[%s67 + $0x10] sm:$0xf]
    %v72 = vld [vmem:[%s67 + $0x18] sm:$0xf]
    %v73 = vld [vmem:[%s67 + $0x1c] sm:$0xf]
    %v74 = vld [vmem:[%s67 + $0x24] sm:$0xf]
    %v75 = vld [vmem:[%s67 + $0x28] sm:$0xf]
    %v76 = vld [vmem:[%s67 + $0x30] sm:$0xf]
    %v77 = vld [vmem:[%s67 + $0x34] sm:$0xf]
    %v78 = vld [vmem:[%s67 + $0x3c] sm:$0xf]
    %v79 = vld [vmem:[%s67 + $0x40] sm:$0xf]
    %v80 = vld [vmem:[%s67 + $0x48] sm:$0xf]
    %v81 = vld [vmem:[%s67 + $0x4c] sm:$0xf]
    %v82 = vld [vmem:[%s67 + $0x54] sm:$0xf]
    %v83 = vld [vmem:[%s67 + $0x58] sm:$0xf]
    %v84 = vld [vmem:[%s67 + $0x60] sm:$0xf]
    %v85 = vld [vmem:[%s67 + $0x64] sm:$0xf]
    %v86 = vld [vmem:[%s67 + $0x6c] sm:$0xf]
    %v87 = vld [vmem:[%s67 + $0x70] sm:$0xf]
    %v88 = vld [vmem:[%s67 + $0x78] sm:$0xf]
    %v89 = vld [vmem:[%s67 + $0x7c] sm:$0xf]
    %v90 = vld [vmem:[%s67 + $0x8] sm:$0x1]
    %v91 = vld [vmem:[%s67 + $0x14] sm:$0x1]
    %v92 = vld [vmem:[%s67 + $0x20] sm:$0x1]
    %v93 = vld [vmem:[%s67 + $0x2c] sm:$0x1]
    %v94 = vld [vmem:[%s67 + $0x38] sm:$0x1]
    %v95 = vld [vmem:[%s67 + $0x44] sm:$0x1]
    %v96 = vld [vmem:[%s67 + $0x50] sm:$0x1]
    %v97 = vld [vmem:[%s67 + $0x5c] sm:$0x1]
    %v98 = vld [vmem:[%s67 + $0x68] sm:$0x1]
    %v99 = vld [vmem:[%s67 + $0x74] sm:$0x1]
    %v100 = vld [vmem:[%s67 + $0x80] sm:$0x1]
    %v101 = vld [vmem:[%s67] sm:$0xe]
    %v102 = vld [vmem:[%s67 + $0xc] sm:$0xe]
    %v103 = vld [vmem:[%s67 + $0x18] sm:$0xe]
    %v104 = vld [vmem:[%s67 + $0x24] sm:$0xe]
    %v105 = vld [vmem:[%s67 + $0x30] sm:$0xe]
    %v106 = vld [vmem:[%s67 + $0x3c] sm:$0xe]
    %v107 = vld [vmem:[%s67 + $0x48] sm:$0xe]
    %v108 = vld [vmem:[%s67 + $0x54] sm:$0xe]
    %v109 = vld [vmem:[%s67 + $0x60] sm:$0xe]
    %v110 = vld [vmem:[%s67 + $0x6c] sm:$0xe]
    %v111 = vld [vmem:[%s67 + $0x78] sm:$0xe]
    %s112 = sadd.s32 %s16, 2
    %s113 = smul.u32 %s112, 3
    %s114 = smul.addr %s113, 4
    %s115 = scalar_lea.vmem %s0, %s114
    %v116 = vld [vmem:[%s115] sm:$0xf]
    %v117 = vld [vmem:[%s115 + $0x4] sm:$0xf]
    %v118 = vld [vmem:[%s115 + $0xc] sm:$0xf]
    %v119 = vld [vmem:[%s115 + $0x10] sm:$0xf]
    %v120 = vld [vmem:[%s115 + $0x18] sm:$0xf]
    %v121 = vld [vmem:[%s115 + $0x1c] sm:$0xf]
    %v122 = vld [vmem:[%s115 + $0x24] sm:$0xf]
    %v123 = vld [vmem:[%s115 + $0x28] sm:$0xf]
    %v124 = vld [vmem:[%s115 + $0x30] sm:$0xf]
    %v125 = vld [vmem:[%s115 + $0x34] sm:$0xf]
    %v126 = vld [vmem:[%s115 + $0x3c] sm:$0xf]
    %v127 = vld [vmem:[%s115 + $0x40] sm:$0xf]
    %v128 = vld [vmem:[%s115 + $0x48] sm:$0xf]
    %v129 = vld [vmem:[%s115 + $0x4c] sm:$0xf]
    %v130 = vld [vmem:[%s115 + $0x54] sm:$0xf]
    %v131 = vld [vmem:[%s115 + $0x58] sm:$0xf]
    %v132 = vld [vmem:[%s115 + $0x60] sm:$0xf]
    %v133 = vld [vmem:[%s115 + $0x64] sm:$0xf]
    %v134 = vld [vmem:[%s115 + $0x6c] sm:$0xf]
    %v135 = vld [vmem:[%s115 + $0x70] sm:$0xf]
    %v136 = vld [vmem:[%s115 + $0x78] sm:$0xf]
    %v137 = vld [vmem:[%s115 + $0x7c] sm:$0xf]
    %v138 = vld [vmem:[%s115 + $0x8] sm:$0x1]
    %v139 = vld [vmem:[%s115 + $0x14] sm:$0x1]
    %v140 = vld [vmem:[%s115 + $0x20] sm:$0x1]
    %v141 = vld [vmem:[%s115 + $0x2c] sm:$0x1]
    %v142 = vld [vmem:[%s115 + $0x38] sm:$0x1]
    %v143 = vld [vmem:[%s115 + $0x44] sm:$0x1]
    %v144 = vld [vmem:[%s115 + $0x50] sm:$0x1]
    %v145 = vld [vmem:[%s115 + $0x5c] sm:$0x1]
    %v146 = vld [vmem:[%s115 + $0x68] sm:$0x1]
    %v147 = vld [vmem:[%s115 + $0x74] sm:$0x1]
    %v148 = vld [vmem:[%s115 + $0x80] sm:$0x1]
    %v149 = vld [vmem:[%s115] sm:$0xe]
    %v150 = vld [vmem:[%s115 + $0xc] sm:$0xe]
    %v151 = vld [vmem:[%s115 + $0x18] sm:$0xe]
    %v152 = vld [vmem:[%s115 + $0x24] sm:$0xe]
    %v153 = vld [vmem:[%s115 + $0x30] sm:$0xe]
    %v154 = vld [vmem:[%s115 + $0x3c] sm:$0xe]
    %v155 = vld [vmem:[%s115 + $0x48] sm:$0xe]
    %v156 = vld [vmem:[%s115 + $0x54] sm:$0xe]
    %v157 = vld [vmem:[%s115 + $0x60] sm:$0xe]
    %v158 = vld [vmem:[%s115 + $0x6c] sm:$0xe]
    %v159 = vld [vmem:[%s115 + $0x78] sm:$0xe]
    %v182 = vunpack.c.l.b16 %v20
    %v183 = vunpack.c.l.b16 %v21
    %v184 = vunpack.c.l.b16 %v22
    %v185 = vunpack.c.l.b16 %v23
    %v186 = vunpack.c.l.b16 %v24
    %v187 = vunpack.c.l.b16 %v25
    %v188 = vunpack.c.l.b16 %v26
    %v189 = vunpack.c.l.b16 %v27
    %v190 = vunpack.c.l.b16 %v28
    %v191 = vunpack.c.l.b16 %v29
    %v192 = vunpack.c.l.b16 %v30
    %v193 = vunpack.c.l.b16 %v31
    %v194 = vunpack.c.l.b16 %v32
    %v195 = vunpack.c.l.b16 %v33
    %v196 = vunpack.c.l.b16 %v34
    %v197 = vunpack.c.l.b16 %v35
    %v198 = vunpack.c.l.b16 %v36
    %v199 = vunpack.c.l.b16 %v37
    %v200 = vunpack.c.l.b16 %v38
    %v201 = vunpack.c.l.b16 %v39
    %v202 = vunpack.c.l.b16 %v40
    %v203 = vunpack.c.l.b16 %v41
    %v204 = vpack.c.b16 %v183, %v182
    %v205 = vpack.c.b16 %v185, %v184
    %v206 = vpack.c.b16 %v187, %v186
    %v207 = vpack.c.b16 %v189, %v188
    %v208 = vpack.c.b16 %v191, %v190
    %v209 = vpack.c.b16 %v193, %v192
    %v210 = vpack.c.b16 %v195, %v194
    %v211 = vpack.c.b16 %v197, %v196
    %v212 = vpack.c.b16 %v199, %v198
    %v213 = vpack.c.b16 %v201, %v200
    %v214 = vpack.c.b16 %v203, %v202
    %v226 = vunpack.c.l.b16 %v42
    %v227 = vunpack.c.l.b16 %v43
    %v228 = vunpack.c.l.b16 %v44
    %v229 = vunpack.c.l.b16 %v45
    %v230 = vunpack.c.l.b16 %v46
    %v231 = vunpack.c.l.b16 %v47
    %v232 = vunpack.c.l.b16 %v48
    %v233 = vunpack.c.l.b16 %v49
    %v234 = vunpack.c.l.b16 %v50
    %v235 = vunpack.c.l.b16 %v51
    %v236 = vunpack.c.l.b16 %v52
    %v237 = vpack.c.b16 %v226, %v226
    %v238 = vpack.c.b16 %v227, %v227
    %v239 = vpack.c.b16 %v228, %v228
    %v240 = vpack.c.b16 %v229, %v229
    %v241 = vpack.c.b16 %v230, %v230
    %v242 = vpack.c.b16 %v231, %v231
    %v243 = vpack.c.b16 %v232, %v232
    %v244 = vpack.c.b16 %v233, %v233
    %v245 = vpack.c.b16 %v234, %v234
    %v246 = vpack.c.b16 %v235, %v235
    %v247 = vpack.c.b16 %v236, %v236
    %vm248 = vsmask.f32 7424
    %v250 = vshrl.u32 %v204, 16
    %v252 = vshll.u32 %v204, 16
    %v254 = vrot.slane %v252, 1
    %v255 = vor.u32 %v250, %v254
    %v257 = vshll.u32 %v237, 16
    %v259 = vrot.slane %v257, 1
    %v260 = vsel %vm248, %v255, %v259
    %v262 = vshrl.u32 %v205, 16
    %v264 = vshll.u32 %v205, 16
    %v266 = vrot.slane %v264, 1
    %v267 = vor.u32 %v262, %v266
    %v269 = vshll.u32 %v238, 16
    %v271 = vrot.slane %v269, 1
    %v272 = vsel %vm248, %v267, %v271
    %v274 = vshrl.u32 %v206, 16
    %v276 = vshll.u32 %v206, 16
    %v278 = vrot.slane %v276, 1
    %v279 = vor.u32 %v274, %v278
    %v281 = vshll.u32 %v239, 16
    %v283 = vrot.slane %v281, 1
    %v284 = vsel %vm248, %v279, %v283
    %v286 = vshrl.u32 %v207, 16
    %v288 = vshll.u32 %v207, 16
    %v290 = vrot.slane %v288, 1
    %v291 = vor.u32 %v286, %v290
    %v293 = vshll.u32 %v240, 16
    %v295 = vrot.slane %v293, 1
    %v296 = vsel %vm248, %v291, %v295
    %v298 = vshrl.u32 %v208, 16
    %v300 = vshll.u32 %v208, 16
    %v302 = vrot.slane %v300, 1
    %v303 = vor.u32 %v298, %v302
    %v305 = vshll.u32 %v241, 16
    %v307 = vrot.slane %v305, 1
    %v308 = vsel %vm248, %v303, %v307
    %v310 = vshrl.u32 %v209, 16
    %v312 = vshll.u32 %v209, 16
    %v314 = vrot.slane %v312, 1
    %v315 = vor.u32 %v310, %v314
    %v317 = vshll.u32 %v242, 16
    %v319 = vrot.slane %v317, 1
    %v320 = vsel %vm248, %v315, %v319
    %v322 = vshrl.u32 %v210, 16
    %v324 = vshll.u32 %v210, 16
    %v326 = vrot.slane %v324, 1
    %v327 = vor.u32 %v322, %v326
    %v329 = vshll.u32 %v243, 16
    %v331 = vrot.slane %v329, 1
    %v332 = vsel %vm248, %v327, %v331
    %v334 = vshrl.u32 %v211, 16
    %v336 = vshll.u32 %v211, 16
    %v338 = vrot.slane %v336, 1
    %v339 = vor.u32 %v334, %v338
    %v341 = vshll.u32 %v244, 16
    %v343 = vrot.slane %v341, 1
    %v344 = vsel %vm248, %v339, %v343
    %v346 = vshrl.u32 %v212, 16
    %v348 = vshll.u32 %v212, 16
    %v350 = vrot.slane %v348, 1
    %v351 = vor.u32 %v346, %v350
    %v353 = vshll.u32 %v245, 16
    %v355 = vrot.slane %v353, 1
    %v356 = vsel %vm248, %v351, %v355
    %v358 = vshrl.u32 %v213, 16
    %v360 = vshll.u32 %v213, 16
    %v362 = vrot.slane %v360, 1
    %v363 = vor.u32 %v358, %v362
    %v365 = vshll.u32 %v246, 16
    %v367 = vrot.slane %v365, 1
    %v368 = vsel %vm248, %v363, %v367
    %v370 = vshrl.u32 %v214, 16
    %v372 = vshll.u32 %v214, 16
    %v374 = vrot.slane %v372, 1
    %v375 = vor.u32 %v370, %v374
    %v377 = vshll.u32 %v247, 16
    %v379 = vrot.slane %v377, 1
    %v380 = vsel %vm248, %v375, %v379
    %381 = vrot.lane.b32.xlu0 %v260, 5
    %v382 = vpop.permute.xlu0 %381
    %383 = vrot.lane.b32.xlu0 %v272, 5
    %v384 = vpop.permute.xlu0 %383
    %385 = vrot.lane.b32.xlu0 %v284, 5
    %v386 = vpop.permute.xlu0 %385
    %387 = vrot.lane.b32.xlu0 %v296, 5
    %v388 = vpop.permute.xlu0 %387
    %389 = vrot.lane.b32.xlu0 %v308, 5
    %v390 = vpop.permute.xlu0 %389
    %391 = vrot.lane.b32.xlu0 %v320, 5
    %v392 = vpop.permute.xlu0 %391
    %393 = vrot.lane.b32.xlu0 %v332, 5
    %v394 = vpop.permute.xlu0 %393
    %395 = vrot.lane.b32.xlu0 %v344, 5
    %v396 = vpop.permute.xlu0 %395
    %397 = vrot.lane.b32.xlu0 %v356, 5
    %v398 = vpop.permute.xlu0 %397
    %399 = vrot.lane.b32.xlu0 %v368, 5
    %v400 = vpop.permute.xlu0 %399
    %401 = vrot.lane.b32.xlu0 %v380, 5
    %v402 = vpop.permute.xlu0 %401
    %v414 = vunpack.c.l.b16 %v53
    %v415 = vunpack.c.l.b16 %v54
    %v416 = vunpack.c.l.b16 %v55
    %v417 = vunpack.c.l.b16 %v56
    %v418 = vunpack.c.l.b16 %v57
    %v419 = vunpack.c.l.b16 %v58
    %v420 = vunpack.c.l.b16 %v59
    %v421 = vunpack.c.l.b16 %v60
    %v422 = vunpack.c.l.b16 %v61
    %v423 = vunpack.c.l.b16 %v62
    %v424 = vunpack.c.l.b16 %v63
    %v425 = vpack.c.b16 %v183, %v414
    %v426 = vpack.c.b16 %v185, %v415
    %v427 = vpack.c.b16 %v187, %v416
    %v428 = vpack.c.b16 %v189, %v417
    %v429 = vpack.c.b16 %v191, %v418
    %v430 = vpack.c.b16 %v193, %v419
    %v431 = vpack.c.b16 %v195, %v420
    %v432 = vpack.c.b16 %v197, %v421
    %v433 = vpack.c.b16 %v199, %v422
    %v434 = vpack.c.b16 %v201, %v423
    %v435 = vpack.c.b16 %v203, %v424
    %vm436 = vcmask 1046528
    %v437 = vrot.slane %v425, 1
    %v438 = vrot.slane %v237, 1
    %v439 = vsel %vm436, %v437, %v438
    %v440 = vrot.slane %v426, 1
    %v441 = vrot.slane %v238, 1
    %v442 = vsel %vm436, %v440, %v441
    %v443 = vrot.slane %v427, 1
    %v444 = vrot.slane %v239, 1
    %v445 = vsel %vm436, %v443, %v444
    %v446 = vrot.slane %v428, 1
    %v447 = vrot.slane %v240, 1
    %v448 = vsel %vm436, %v446, %v447
    %v449 = vrot.slane %v429, 1
    %v450 = vrot.slane %v241, 1
    %v451 = vsel %vm436, %v449, %v450
    %v452 = vrot.slane %v430, 1
    %v453 = vrot.slane %v242, 1
    %v454 = vsel %vm436, %v452, %v453
    %v455 = vrot.slane %v431, 1
    %v456 = vrot.slane %v243, 1
    %v457 = vsel %vm436, %v455, %v456
    %v458 = vrot.slane %v432, 1
    %v459 = vrot.slane %v244, 1
    %v460 = vsel %vm436, %v458, %v459
    %v461 = vrot.slane %v433, 1
    %v462 = vrot.slane %v245, 1
    %v463 = vsel %vm436, %v461, %v462
    %v464 = vrot.slane %v434, 1
    %v465 = vrot.slane %v246, 1
    %v466 = vsel %vm436, %v464, %v465
    %v467 = vrot.slane %v435, 1
    %v468 = vrot.slane %v247, 1
    %v469 = vsel %vm436, %v467, %v468
    %470 = vrot.lane.b32.xlu0 %v439, 10
    %v471 = vpop.permute.xlu0 %470
    %472 = vrot.lane.b32.xlu0 %v442, 10
    %v473 = vpop.permute.xlu0 %472
    %474 = vrot.lane.b32.xlu0 %v445, 10
    %v475 = vpop.permute.xlu0 %474
    %476 = vrot.lane.b32.xlu0 %v448, 10
    %v477 = vpop.permute.xlu0 %476
    %478 = vrot.lane.b32.xlu0 %v451, 10
    %v479 = vpop.permute.xlu0 %478
    %480 = vrot.lane.b32.xlu0 %v454, 10
    %v481 = vpop.permute.xlu0 %480
    %482 = vrot.lane.b32.xlu0 %v457, 10
    %v483 = vpop.permute.xlu0 %482
    %484 = vrot.lane.b32.xlu0 %v460, 10
    %v485 = vpop.permute.xlu0 %484
    %486 = vrot.lane.b32.xlu0 %v463, 10
    %v487 = vpop.permute.xlu0 %486
    %488 = vrot.lane.b32.xlu0 %v466, 10
    %v489 = vpop.permute.xlu0 %488
    %490 = vrot.lane.b32.xlu0 %v469, 10
    %v491 = vpop.permute.xlu0 %490
    %v514 = vunpack.c.l.b16 %v68
    %v515 = vunpack.c.l.b16 %v69
    %v516 = vunpack.c.l.b16 %v70
    %v517 = vunpack.c.l.b16 %v71
    %v518 = vunpack.c.l.b16 %v72
    %v519 = vunpack.c.l.b16 %v73
    %v520 = vunpack.c.l.b16 %v74
    %v521 = vunpack.c.l.b16 %v75
    %v522 = vunpack.c.l.b16 %v76
    %v523 = vunpack.c.l.b16 %v77
    %v524 = vunpack.c.l.b16 %v78
    %v525 = vunpack.c.l.b16 %v79
    %v526 = vunpack.c.l.b16 %v80
    %v527 = vunpack.c.l.b16 %v81
    %v528 = vunpack.c.l.b16 %v82
    %v529 = vunpack.c.l.b16 %v83
    %v530 = vunpack.c.l.b16 %v84
    %v531 = vunpack.c.l.b16 %v85
    %v532 = vunpack.c.l.b16 %v86
    %v533 = vunpack.c.l.b16 %v87
    %v534 = vunpack.c.l.b16 %v88
    %v535 = vunpack.c.l.b16 %v89
    %v536 = vpack.c.b16 %v515, %v514
    %v537 = vpack.c.b16 %v517, %v516
    %v538 = vpack.c.b16 %v519, %v518
    %v539 = vpack.c.b16 %v521, %v520
    %v540 = vpack.c.b16 %v523, %v522
    %v541 = vpack.c.b16 %v525, %v524
    %v542 = vpack.c.b16 %v527, %v526
    %v543 = vpack.c.b16 %v529, %v528
    %v544 = vpack.c.b16 %v531, %v530
    %v545 = vpack.c.b16 %v533, %v532
    %v546 = vpack.c.b16 %v535, %v534
    %547 = vrot.lane.b32.xlu0 %v536, 15
    %v548 = vpop.permute.xlu0 %547
    %549 = vrot.lane.b32.xlu0 %v537, 15
    %v550 = vpop.permute.xlu0 %549
    %551 = vrot.lane.b32.xlu0 %v538, 15
    %v552 = vpop.permute.xlu0 %551
    %553 = vrot.lane.b32.xlu0 %v539, 15
    %v554 = vpop.permute.xlu0 %553
    %555 = vrot.lane.b32.xlu0 %v540, 15
    %v556 = vpop.permute.xlu0 %555
    %557 = vrot.lane.b32.xlu0 %v541, 15
    %v558 = vpop.permute.xlu0 %557
    %559 = vrot.lane.b32.xlu0 %v542, 15
    %v560 = vpop.permute.xlu0 %559
    %561 = vrot.lane.b32.xlu0 %v543, 15
    %v562 = vpop.permute.xlu0 %561
    %563 = vrot.lane.b32.xlu0 %v544, 15
    %v564 = vpop.permute.xlu0 %563
    %565 = vrot.lane.b32.xlu0 %v545, 15
    %v566 = vpop.permute.xlu0 %565
    %567 = vrot.lane.b32.xlu0 %v546, 15
    %v568 = vpop.permute.xlu0 %567
    %v580 = vunpack.c.l.b16 %v90
    %v581 = vunpack.c.l.b16 %v91
    %v582 = vunpack.c.l.b16 %v92
    %v583 = vunpack.c.l.b16 %v93
    %v584 = vunpack.c.l.b16 %v94
    %v585 = vunpack.c.l.b16 %v95
    %v586 = vunpack.c.l.b16 %v96
    %v587 = vunpack.c.l.b16 %v97
    %v588 = vunpack.c.l.b16 %v98
    %v589 = vunpack.c.l.b16 %v99
    %v590 = vunpack.c.l.b16 %v100
    %v591 = vpack.c.b16 %v580, %v580
    %v592 = vpack.c.b16 %v581, %v581
    %v593 = vpack.c.b16 %v582, %v582
    %v594 = vpack.c.b16 %v583, %v583
    %v595 = vpack.c.b16 %v584, %v584
    %v596 = vpack.c.b16 %v585, %v585
    %v597 = vpack.c.b16 %v586, %v586
    %v598 = vpack.c.b16 %v587, %v587
    %v599 = vpack.c.b16 %v588, %v588
    %v600 = vpack.c.b16 %v589, %v589
    %v601 = vpack.c.b16 %v590, %v590
    %v603 = vshrl.u32 %v536, 16
    %v605 = vshll.u32 %v536, 16
    %v607 = vrot.slane %v605, 1
    %v608 = vor.u32 %v603, %v607
    %v610 = vshll.u32 %v591, 16
    %v612 = vrot.slane %v610, 1
    %v613 = vsel %vm248, %v608, %v612
    %v615 = vshrl.u32 %v537, 16
    %v617 = vshll.u32 %v537, 16
    %v619 = vrot.slane %v617, 1
    %v620 = vor.u32 %v615, %v619
    %v622 = vshll.u32 %v592, 16
    %v624 = vrot.slane %v622, 1
    %v625 = vsel %vm248, %v620, %v624
    %v627 = vshrl.u32 %v538, 16
    %v629 = vshll.u32 %v538, 16
    %v631 = vrot.slane %v629, 1
    %v632 = vor.u32 %v627, %v631
    %v634 = vshll.u32 %v593, 16
    %v636 = vrot.slane %v634, 1
    %v637 = vsel %vm248, %v632, %v636
    %v639 = vshrl.u32 %v539, 16
    %v641 = vshll.u32 %v539, 16
    %v643 = vrot.slane %v641, 1
    %v644 = vor.u32 %v639, %v643
    %v646 = vshll.u32 %v594, 16
    %v648 = vrot.slane %v646, 1
    %v649 = vsel %vm248, %v644, %v648
    %v651 = vshrl.u32 %v540, 16
    %v653 = vshll.u32 %v540, 16
    %v655 = vrot.slane %v653, 1
    %v656 = vor.u32 %v651, %v655
    %v658 = vshll.u32 %v595, 16
    %v660 = vrot.slane %v658, 1
    %v661 = vsel %vm248, %v656, %v660
    %v663 = vshrl.u32 %v541, 16
    %v665 = vshll.u32 %v541, 16
    %v667 = vrot.slane %v665, 1
    %v668 = vor.u32 %v663, %v667
    %v670 = vshll.u32 %v596, 16
    %v672 = vrot.slane %v670, 1
    %v673 = vsel %vm248, %v668, %v672
    %v675 = vshrl.u32 %v542, 16
    %v677 = vshll.u32 %v542, 16
    %v679 = vrot.slane %v677, 1
    %v680 = vor.u32 %v675, %v679
    %v682 = vshll.u32 %v597, 16
    %v684 = vrot.slane %v682, 1
    %v685 = vsel %vm248, %v680, %v684
    %v687 = vshrl.u32 %v543, 16
    %v689 = vshll.u32 %v543, 16
    %v691 = vrot.slane %v689, 1
    %v692 = vor.u32 %v687, %v691
    %v694 = vshll.u32 %v598, 16
    %v696 = vrot.slane %v694, 1
    %v697 = vsel %vm248, %v692, %v696
    %v699 = vshrl.u32 %v544, 16
    %v701 = vshll.u32 %v544, 16
    %v703 = vrot.slane %v701, 1
    %v704 = vor.u32 %v699, %v703
    %v706 = vshll.u32 %v599, 16
    %v708 = vrot.slane %v706, 1
    %v709 = vsel %vm248, %v704, %v708
    %v711 = vshrl.u32 %v545, 16
    %v713 = vshll.u32 %v545, 16
    %v715 = vrot.slane %v713, 1
    %v716 = vor.u32 %v711, %v715
    %v718 = vshll.u32 %v600, 16
    %v720 = vrot.slane %v718, 1
    %v721 = vsel %vm248, %v716, %v720
    %v723 = vshrl.u32 %v546, 16
    %v725 = vshll.u32 %v546, 16
    %v727 = vrot.slane %v725, 1
    %v728 = vor.u32 %v723, %v727
    %v730 = vshll.u32 %v601, 16
    %v732 = vrot.slane %v730, 1
    %v733 = vsel %vm248, %v728, %v732
    %734 = vrot.lane.b32.xlu0 %v613, 20
    %v735 = vpop.permute.xlu0 %734
    %736 = vrot.lane.b32.xlu0 %v625, 20
    %v737 = vpop.permute.xlu0 %736
    %738 = vrot.lane.b32.xlu0 %v637, 20
    %v739 = vpop.permute.xlu0 %738
    %740 = vrot.lane.b32.xlu0 %v649, 20
    %v741 = vpop.permute.xlu0 %740
    %742 = vrot.lane.b32.xlu0 %v661, 20
    %v743 = vpop.permute.xlu0 %742
    %744 = vrot.lane.b32.xlu0 %v673, 20
    %v745 = vpop.permute.xlu0 %744
    %746 = vrot.lane.b32.xlu0 %v685, 20
    %v747 = vpop.permute.xlu0 %746
    %748 = vrot.lane.b32.xlu0 %v697, 20
    %v749 = vpop.permute.xlu0 %748
    %750 = vrot.lane.b32.xlu0 %v709, 20
    %v751 = vpop.permute.xlu0 %750
    %752 = vrot.lane.b32.xlu0 %v721, 20
    %v753 = vpop.permute.xlu0 %752
    %754 = vrot.lane.b32.xlu0 %v733, 20
    %v755 = vpop.permute.xlu0 %754
    %v767 = vunpack.c.l.b16 %v101
    %v768 = vunpack.c.l.b16 %v102
    %v769 = vunpack.c.l.b16 %v103
    %v770 = vunpack.c.l.b16 %v104
    %v771 = vunpack.c.l.b16 %v105
    %v772 = vunpack.c.l.b16 %v106
    %v773 = vunpack.c.l.b16 %v107
    %v774 = vunpack.c.l.b16 %v108
    %v775 = vunpack.c.l.b16 %v109
    %v776 = vunpack.c.l.b16 %v110
    %v777 = vunpack.c.l.b16 %v111
    %v778 = vpack.c.b16 %v515, %v767
    %v779 = vpack.c.b16 %v517, %v768
    %v780 = vpack.c.b16 %v519, %v769
    %v781 = vpack.c.b16 %v521, %v770
    %v782 = vpack.c.b16 %v523, %v771
    %v783 = vpack.c.b16 %v525, %v772
    %v784 = vpack.c.b16 %v527, %v773
    %v785 = vpack.c.b16 %v529, %v774
    %v786 = vpack.c.b16 %v531, %v775
    %v787 = vpack.c.b16 %v533, %v776
    %v788 = vpack.c.b16 %v535, %v777
    %v789 = vrot.slane %v778, 1
    %v790 = vrot.slane %v591, 1
    %v791 = vsel %vm436, %v789, %v790
    %v792 = vrot.slane %v779, 1
    %v793 = vrot.slane %v592, 1
    %v794 = vsel %vm436, %v792, %v793
    %v795 = vrot.slane %v780, 1
    %v796 = vrot.slane %v593, 1
    %v797 = vsel %vm436, %v795, %v796
    %v798 = vrot.slane %v781, 1
    %v799 = vrot.slane %v594, 1
    %v800 = vsel %vm436, %v798, %v799
    %v801 = vrot.slane %v782, 1
    %v802 = vrot.slane %v595, 1
    %v803 = vsel %vm436, %v801, %v802
    %v804 = vrot.slane %v783, 1
    %v805 = vrot.slane %v596, 1
    %v806 = vsel %vm436, %v804, %v805
    %v807 = vrot.slane %v784, 1
    %v808 = vrot.slane %v597, 1
    %v809 = vsel %vm436, %v807, %v808
    %v810 = vrot.slane %v785, 1
    %v811 = vrot.slane %v598, 1
    %v812 = vsel %vm436, %v810, %v811
    %v813 = vrot.slane %v786, 1
    %v814 = vrot.slane %v599, 1
    %v815 = vsel %vm436, %v813, %v814
    %v816 = vrot.slane %v787, 1
    %v817 = vrot.slane %v600, 1
    %v818 = vsel %vm436, %v816, %v817
    %v819 = vrot.slane %v788, 1
    %v820 = vrot.slane %v601, 1
    %v821 = vsel %vm436, %v819, %v820
    %822 = vrot.lane.b32.xlu0 %v791, 25
    %v823 = vpop.permute.xlu0 %822
    %824 = vrot.lane.b32.xlu0 %v794, 25
    %v825 = vpop.permute.xlu0 %824
    %826 = vrot.lane.b32.xlu0 %v797, 25
    %v827 = vpop.permute.xlu0 %826
    %828 = vrot.lane.b32.xlu0 %v800, 25
    %v829 = vpop.permute.xlu0 %828
    %830 = vrot.lane.b32.xlu0 %v803, 25
    %v831 = vpop.permute.xlu0 %830
    %832 = vrot.lane.b32.xlu0 %v806, 25
    %v833 = vpop.permute.xlu0 %832
    %834 = vrot.lane.b32.xlu0 %v809, 25
    %v835 = vpop.permute.xlu0 %834
    %836 = vrot.lane.b32.xlu0 %v812, 25
    %v837 = vpop.permute.xlu0 %836
    %838 = vrot.lane.b32.xlu0 %v815, 25
    %v839 = vpop.permute.xlu0 %838
    %840 = vrot.lane.b32.xlu0 %v818, 25
    %v841 = vpop.permute.xlu0 %840
    %842 = vrot.lane.b32.xlu0 %v821, 25
    %v843 = vpop.permute.xlu0 %842
    %v866 = vunpack.c.l.b16 %v116
    %v867 = vunpack.c.l.b16 %v117
    %v868 = vunpack.c.l.b16 %v118
    %v869 = vunpack.c.l.b16 %v119
    %v870 = vunpack.c.l.b16 %v120
    %v871 = vunpack.c.l.b16 %v121
    %v872 = vunpack.c.l.b16 %v122
    %v873 = vunpack.c.l.b16 %v123
    %v874 = vunpack.c.l.b16 %v124
    %v875 = vunpack.c.l.b16 %v125
    %v876 = vunpack.c.l.b16 %v126
    %v877 = vunpack.c.l.b16 %v127
    %v878 = vunpack.c.l.b16 %v128
    %v879 = vunpack.c.l.b16 %v129
    %v880 = vunpack.c.l.b16 %v130
    %v881 = vunpack.c.l.b16 %v131
    %v882 = vunpack.c.l.b16 %v132
    %v883 = vunpack.c.l.b16 %v133
    %v884 = vunpack.c.l.b16 %v134
    %v885 = vunpack.c.l.b16 %v135
    %v886 = vunpack.c.l.b16 %v136
    %v887 = vunpack.c.l.b16 %v137
    %v888 = vpack.c.b16 %v867, %v866
    %v889 = vpack.c.b16 %v869, %v868
    %v890 = vpack.c.b16 %v871, %v870
    %v891 = vpack.c.b16 %v873, %v872
    %v892 = vpack.c.b16 %v875, %v874
    %v893 = vpack.c.b16 %v877, %v876
    %v894 = vpack.c.b16 %v879, %v878
    %v895 = vpack.c.b16 %v881, %v880
    %v896 = vpack.c.b16 %v883, %v882
    %v897 = vpack.c.b16 %v885, %v884
    %v898 = vpack.c.b16 %v887, %v886
    %899 = vrot.lane.b32.xlu0 %v888, 30
    %v900 = vpop.permute.xlu0 %899
    %901 = vrot.lane.b32.xlu0 %v889, 30
    %v902 = vpop.permute.xlu0 %901
    %903 = vrot.lane.b32.xlu0 %v890, 30
    %v904 = vpop.permute.xlu0 %903
    %905 = vrot.lane.b32.xlu0 %v891, 30
    %v906 = vpop.permute.xlu0 %905
    %907 = vrot.lane.b32.xlu0 %v892, 30
    %v908 = vpop.permute.xlu0 %907
    %909 = vrot.lane.b32.xlu0 %v893, 30
    %v910 = vpop.permute.xlu0 %909
    %911 = vrot.lane.b32.xlu0 %v894, 30
    %v912 = vpop.permute.xlu0 %911
    %913 = vrot.lane.b32.xlu0 %v895, 30
    %v914 = vpop.permute.xlu0 %913
    %915 = vrot.lane.b32.xlu0 %v896, 30
    %v916 = vpop.permute.xlu0 %915
    %917 = vrot.lane.b32.xlu0 %v897, 30
    %v918 = vpop.permute.xlu0 %917
    %919 = vrot.lane.b32.xlu0 %v898, 30
    %v920 = vpop.permute.xlu0 %919
    %v932 = vunpack.c.l.b16 %v138
    %v933 = vunpack.c.l.b16 %v139
    %v934 = vunpack.c.l.b16 %v140
    %v935 = vunpack.c.l.b16 %v141
    %v936 = vunpack.c.l.b16 %v142
    %v937 = vunpack.c.l.b16 %v143
    %v938 = vunpack.c.l.b16 %v144
    %v939 = vunpack.c.l.b16 %v145
    %v940 = vunpack.c.l.b16 %v146
    %v941 = vunpack.c.l.b16 %v147
    %v942 = vunpack.c.l.b16 %v148
    %v943 = vpack.c.b16 %v932, %v932
    %v944 = vpack.c.b16 %v933, %v933
    %v945 = vpack.c.b16 %v934, %v934
    %v946 = vpack.c.b16 %v935, %v935
    %v947 = vpack.c.b16 %v936, %v936
    %v948 = vpack.c.b16 %v937, %v937
    %v949 = vpack.c.b16 %v938, %v938
    %v950 = vpack.c.b16 %v939, %v939
    %v951 = vpack.c.b16 %v940, %v940
    %v952 = vpack.c.b16 %v941, %v941
    %v953 = vpack.c.b16 %v942, %v942
    %v955 = vshrl.u32 %v888, 16
    %v957 = vshll.u32 %v888, 16
    %v959 = vrot.slane %v957, 1
    %v960 = vor.u32 %v955, %v959
    %v962 = vshll.u32 %v943, 16
    %v964 = vrot.slane %v962, 1
    %v965 = vsel %vm248, %v960, %v964
    %v967 = vshrl.u32 %v889, 16
    %v969 = vshll.u32 %v889, 16
    %v971 = vrot.slane %v969, 1
    %v972 = vor.u32 %v967, %v971
    %v974 = vshll.u32 %v944, 16
    %v976 = vrot.slane %v974, 1
    %v977 = vsel %vm248, %v972, %v976
    %v979 = vshrl.u32 %v890, 16
    %v981 = vshll.u32 %v890, 16
    %v983 = vrot.slane %v981, 1
    %v984 = vor.u32 %v979, %v983
    %v986 = vshll.u32 %v945, 16
    %v988 = vrot.slane %v986, 1
    %v989 = vsel %vm248, %v984, %v988
    %v991 = vshrl.u32 %v891, 16
    %v993 = vshll.u32 %v891, 16
    %v995 = vrot.slane %v993, 1
    %v996 = vor.u32 %v991, %v995
    %v998 = vshll.u32 %v946, 16
    %v1000 = vrot.slane %v998, 1
    %v1001 = vsel %vm248, %v996, %v1000
    %v1003 = vshrl.u32 %v892, 16
    %v1005 = vshll.u32 %v892, 16
    %v1007 = vrot.slane %v1005, 1
    %v1008 = vor.u32 %v1003, %v1007
    %v1010 = vshll.u32 %v947, 16
    %v1012 = vrot.slane %v1010, 1
    %v1013 = vsel %vm248, %v1008, %v1012
    %v1015 = vshrl.u32 %v893, 16
    %v1017 = vshll.u32 %v893, 16
    %v1019 = vrot.slane %v1017, 1
    %v1020 = vor.u32 %v1015, %v1019
    %v1022 = vshll.u32 %v948, 16
    %v1024 = vrot.slane %v1022, 1
    %v1025 = vsel %vm248, %v1020, %v1024
    %v1027 = vshrl.u32 %v894, 16
    %v1029 = vshll.u32 %v894, 16
    %v1031 = vrot.slane %v1029, 1
    %v1032 = vor.u32 %v1027, %v1031
    %v1034 = vshll.u32 %v949, 16
    %v1036 = vrot.slane %v1034, 1
    %v1037 = vsel %vm248, %v1032, %v1036
    %v1039 = vshrl.u32 %v895, 16
    %v1041 = vshll.u32 %v895, 16
    %v1043 = vrot.slane %v1041, 1
    %v1044 = vor.u32 %v1039, %v1043
    %v1046 = vshll.u32 %v950, 16
    %v1048 = vrot.slane %v1046, 1
    %v1049 = vsel %vm248, %v1044, %v1048
    %v1051 = vshrl.u32 %v896, 16
    %v1053 = vshll.u32 %v896, 16
    %v1055 = vrot.slane %v1053, 1
    %v1056 = vor.u32 %v1051, %v1055
    %v1058 = vshll.u32 %v951, 16
    %v1060 = vrot.slane %v1058, 1
    %v1061 = vsel %vm248, %v1056, %v1060
    %v1063 = vshrl.u32 %v897, 16
    %v1065 = vshll.u32 %v897, 16
    %v1067 = vrot.slane %v1065, 1
    %v1068 = vor.u32 %v1063, %v1067
    %v1070 = vshll.u32 %v952, 16
    %v1072 = vrot.slane %v1070, 1
    %v1073 = vsel %vm248, %v1068, %v1072
    %v1075 = vshrl.u32 %v898, 16
    %v1077 = vshll.u32 %v898, 16
    %v1079 = vrot.slane %v1077, 1
    %v1080 = vor.u32 %v1075, %v1079
    %v1082 = vshll.u32 %v953, 16
    %v1084 = vrot.slane %v1082, 1
    %v1085 = vsel %vm248, %v1080, %v1084
    %1086 = vrot.lane.b32.xlu0 %v965, 35
    %v1087 = vpop.permute.xlu0 %1086
    %1088 = vrot.lane.b32.xlu0 %v977, 35
    %v1089 = vpop.permute.xlu0 %1088
    %1090 = vrot.lane.b32.xlu0 %v989, 35
    %v1091 = vpop.permute.xlu0 %1090
    %1092 = vrot.lane.b32.xlu0 %v1001, 35
    %v1093 = vpop.permute.xlu0 %1092
    %1094 = vrot.lane.b32.xlu0 %v1013, 35
    %v1095 = vpop.permute.xlu0 %1094
    %1096 = vrot.lane.b32.xlu0 %v1025, 35
    %v1097 = vpop.permute.xlu0 %1096
    %1098 = vrot.lane.b32.xlu0 %v1037, 35
    %v1099 = vpop.permute.xlu0 %1098
    %1100 = vrot.lane.b32.xlu0 %v1049, 35
    %v1101 = vpop.permute.xlu0 %1100
    %1102 = vrot.lane.b32.xlu0 %v1061, 35
    %v1103 = vpop.permute.xlu0 %1102
    %1104 = vrot.lane.b32.xlu0 %v1073, 35
    %v1105 = vpop.permute.xlu0 %1104
    %1106 = vrot.lane.b32.xlu0 %v1085, 35
    %v1107 = vpop.permute.xlu0 %1106
    %v1119 = vunpack.c.l.b16 %v149
    %v1120 = vunpack.c.l.b16 %v150
    %v1121 = vunpack.c.l.b16 %v151
    %v1122 = vunpack.c.l.b16 %v152
    %v1123 = vunpack.c.l.b16 %v153
    %v1124 = vunpack.c.l.b16 %v154
    %v1125 = vunpack.c.l.b16 %v155
    %v1126 = vunpack.c.l.b16 %v156
    %v1127 = vunpack.c.l.b16 %v157
    %v1128 = vunpack.c.l.b16 %v158
    %v1129 = vunpack.c.l.b16 %v159
    %v1130 = vpack.c.b16 %v867, %v1119
    %v1131 = vpack.c.b16 %v869, %v1120
    %v1132 = vpack.c.b16 %v871, %v1121
    %v1133 = vpack.c.b16 %v873, %v1122
    %v1134 = vpack.c.b16 %v875, %v1123
    %v1135 = vpack.c.b16 %v877, %v1124
    %v1136 = vpack.c.b16 %v879, %v1125
    %v1137 = vpack.c.b16 %v881, %v1126
    %v1138 = vpack.c.b16 %v883, %v1127
    %v1139 = vpack.c.b16 %v885, %v1128
    %v1140 = vpack.c.b16 %v887, %v1129
    %v1141 = vrot.slane %v1130, 1
    %v1142 = vrot.slane %v943, 1
    %v1143 = vsel %vm436, %v1141, %v1142
    %v1144 = vrot.slane %v1131, 1
    %v1145 = vrot.slane %v944, 1
    %v1146 = vsel %vm436, %v1144, %v1145
    %v1147 = vrot.slane %v1132, 1
    %v1148 = vrot.slane %v945, 1
    %v1149 = vsel %vm436, %v1147, %v1148
    %v1150 = vrot.slane %v1133, 1
    %v1151 = vrot.slane %v946, 1
    %v1152 = vsel %vm436, %v1150, %v1151
    %v1153 = vrot.slane %v1134, 1
    %v1154 = vrot.slane %v947, 1
    %v1155 = vsel %vm436, %v1153, %v1154
    %v1156 = vrot.slane %v1135, 1
    %v1157 = vrot.slane %v948, 1
    %v1158 = vsel %vm436, %v1156, %v1157
    %v1159 = vrot.slane %v1136, 1
    %v1160 = vrot.slane %v949, 1
    %v1161 = vsel %vm436, %v1159, %v1160
    %v1162 = vrot.slane %v1137, 1
    %v1163 = vrot.slane %v950, 1
    %v1164 = vsel %vm436, %v1162, %v1163
    %v1165 = vrot.slane %v1138, 1
    %v1166 = vrot.slane %v951, 1
    %v1167 = vsel %vm436, %v1165, %v1166
    %v1168 = vrot.slane %v1139, 1
    %v1169 = vrot.slane %v952, 1
    %v1170 = vsel %vm436, %v1168, %v1169
    %v1171 = vrot.slane %v1140, 1
    %v1172 = vrot.slane %v953, 1
    %v1173 = vsel %vm436, %v1171, %v1172
    %1174 = vrot.lane.b32.xlu0 %v1143, 40
    %v1175 = vpop.permute.xlu0 %1174
    %1176 = vrot.lane.b32.xlu0 %v1146, 40
    %v1177 = vpop.permute.xlu0 %1176
    %1178 = vrot.lane.b32.xlu0 %v1149, 40
    %v1179 = vpop.permute.xlu0 %1178
    %1180 = vrot.lane.b32.xlu0 %v1152, 40
    %v1181 = vpop.permute.xlu0 %1180
    %1182 = vrot.lane.b32.xlu0 %v1155, 40
    %v1183 = vpop.permute.xlu0 %1182
    %1184 = vrot.lane.b32.xlu0 %v1158, 40
    %v1185 = vpop.permute.xlu0 %1184
    %1186 = vrot.lane.b32.xlu0 %v1161, 40
    %v1187 = vpop.permute.xlu0 %1186
    %1188 = vrot.lane.b32.xlu0 %v1164, 40
    %v1189 = vpop.permute.xlu0 %1188
    %1190 = vrot.lane.b32.xlu0 %v1167, 40
    %v1191 = vpop.permute.xlu0 %1190
    %1192 = vrot.lane.b32.xlu0 %v1170, 40
    %v1193 = vpop.permute.xlu0 %1192
    %1194 = vrot.lane.b32.xlu0 %v1173, 40
    %v1195 = vpop.permute.xlu0 %1194
    %vm1196 = vcmask 39936
    %v1198 = vsel %vm1196, %v204, %v382
    %v1200 = vsel %vm1196, %v205, %v384
    %v1202 = vsel %vm1196, %v206, %v386
    %v1204 = vsel %vm1196, %v207, %v388
    %v1206 = vsel %vm1196, %v208, %v390
    %v1208 = vsel %vm1196, %v209, %v392
    %v1210 = vsel %vm1196, %v210, %v394
    %v1212 = vsel %vm1196, %v211, %v396
    %v1214 = vsel %vm1196, %v212, %v398
    %v1216 = vsel %vm1196, %v213, %v400
    %v1218 = vsel %vm1196, %v214, %v402
    %vm1219 = vcmask 80896
    %v1221 = vsel %vm1219, %v1198, %v471
    %v1223 = vsel %vm1219, %v1200, %v473
    %v1225 = vsel %vm1219, %v1202, %v475
    %v1227 = vsel %vm1219, %v1204, %v477
    %v1229 = vsel %vm1219, %v1206, %v479
    %v1231 = vsel %vm1219, %v1208, %v481
    %v1233 = vsel %vm1219, %v1210, %v483
    %v1235 = vsel %vm1219, %v1212, %v485
    %v1237 = vsel %vm1219, %v1214, %v487
    %v1239 = vsel %vm1219, %v1216, %v489
    %v1241 = vsel %vm1219, %v1218, %v491
    %vm1242 = vcmask 121856
    %v1244 = vsel %vm1242, %v1221, %v548
    %v1246 = vsel %vm1242, %v1223, %v550
    %v1248 = vsel %vm1242, %v1225, %v552
    %v1250 = vsel %vm1242, %v1227, %v554
    %v1252 = vsel %vm1242, %v1229, %v556
    %v1254 = vsel %vm1242, %v1231, %v558
    %v1256 = vsel %vm1242, %v1233, %v560
    %v1258 = vsel %vm1242, %v1235, %v562
    %v1260 = vsel %vm1242, %v1237, %v564
    %v1262 = vsel %vm1242, %v1239, %v566
    %v1264 = vsel %vm1242, %v1241, %v568
    %vm1265 = vcmask 162816
    %v1267 = vsel %vm1265, %v1244, %v735
    %v1269 = vsel %vm1265, %v1246, %v737
    %v1271 = vsel %vm1265, %v1248, %v739
    %v1273 = vsel %vm1265, %v1250, %v741
    %v1275 = vsel %vm1265, %v1252, %v743
    %v1277 = vsel %vm1265, %v1254, %v745
    %v1279 = vsel %vm1265, %v1256, %v747
    %v1281 = vsel %vm1265, %v1258, %v749
    %v1283 = vsel %vm1265, %v1260, %v751
    %v1285 = vsel %vm1265, %v1262, %v753
    %v1287 = vsel %vm1265, %v1264, %v755
    %vm1288 = vcmask 203776
    %v1290 = vsel %vm1288, %v1267, %v823
    %v1292 = vsel %vm1288, %v1269, %v825
    %v1294 = vsel %vm1288, %v1271, %v827
    %v1296 = vsel %vm1288, %v1273, %v829
    %v1298 = vsel %vm1288, %v1275, %v831
    %v1300 = vsel %vm1288, %v1277, %v833
    %v1302 = vsel %vm1288, %v1279, %v835
    %v1304 = vsel %vm1288, %v1281, %v837
    %v1306 = vsel %vm1288, %v1283, %v839
    %v1308 = vsel %vm1288, %v1285, %v841
    %v1310 = vsel %vm1288, %v1287, %v843
    %vm1311 = vcmask 244736
    %v1313 = vsel %vm1311, %v1290, %v900
    %v1315 = vsel %vm1311, %v1292, %v902
    %v1317 = vsel %vm1311, %v1294, %v904
    %v1319 = vsel %vm1311, %v1296, %v906
    %v1321 = vsel %vm1311, %v1298, %v908
    %v1323 = vsel %vm1311, %v1300, %v910
    %v1325 = vsel %vm1311, %v1302, %v912
    %v1327 = vsel %vm1311, %v1304, %v914
    %v1329 = vsel %vm1311, %v1306, %v916
    %v1331 = vsel %vm1311, %v1308, %v918
    %v1333 = vsel %vm1311, %v1310, %v920
    %vm1334 = vcmask 285696
    %v1336 = vsel %vm1334, %v1313, %v1087
    %v1338 = vsel %vm1334, %v1315, %v1089
    %v1340 = vsel %vm1334, %v1317, %v1091
    %v1342 = vsel %vm1334, %v1319, %v1093
    %v1344 = vsel %vm1334, %v1321, %v1095
    %v1346 = vsel %vm1334, %v1323, %v1097
    %v1348 = vsel %vm1334, %v1325, %v1099
    %v1350 = vsel %vm1334, %v1327, %v1101
    %v1352 = vsel %vm1334, %v1329, %v1103
    %v1354 = vsel %vm1334, %v1331, %v1105
    %v1356 = vsel %vm1334, %v1333, %v1107
    %vm1357 = vcmask 326656
    %v1359 = vsel %vm1357, %v1336, %v1175
    %v1361 = vsel %vm1357, %v1338, %v1177
    %v1363 = vsel %vm1357, %v1340, %v1179
    %v1365 = vsel %vm1357, %v1342, %v1181
    %v1367 = vsel %vm1357, %v1344, %v1183
    %v1369 = vsel %vm1357, %v1346, %v1185
    %v1371 = vsel %vm1357, %v1348, %v1187
    %v1373 = vsel %vm1357, %v1350, %v1189
    %v1375 = vsel %vm1357, %v1352, %v1191
    %v1377 = vsel %vm1357, %v1354, %v1193
    %v1379 = vsel %vm1357, %v1356, %v1195
    %v1380 = vld [vmem:[%s1] sm:$0xf]
    %v1381 = vld [vmem:[%s1 + $0x4] sm:$0xf]
    %v1382 = vld [vmem:[%s1 + $0x8] sm:$0xf]
    %v1383 = vld [vmem:[%s1 + $0xc] sm:$0xf]
    %v1384 = vld [vmem:[%s1 + $0x10] sm:$0xf]
    %v1385 = vld [vmem:[%s1 + $0x14] sm:$0x7]
    %v1386 = vld [vmem:[%s2] sm:$0x1]
    %v1388 = vlaneseq
    %v1389 = vshrl.u32 %v1388, 7
    %v1390 = vsub.s32 0, %v1389
    %v1391 = vrot.slane %v1386, %v1390
    %v1399 = vunpack.c.l.b16 %v1380
    %v1400 = vunpack.c.l.b16 %v1381
    %v1401 = vunpack.c.l.b16 %v1382
    %v1402 = vunpack.c.l.b16 %v1383
    %v1403 = vunpack.c.l.b16 %v1384
    %v1404 = vunpack.c.l.b16 %v1385
    %v1405 = vpack.c.b16 %v1400, %v1399
    %v1406 = vpack.c.b16 %v1402, %v1401
    %v1407 = vpack.c.b16 %v1404, %v1403
    %vm1410 = vcmask 367616
    %v1411 = vsel %vm1410, %v1359, 0
    %v1413 = vsel %vm1410, %v1361, 0
    %v1415 = vsel %vm1410, %v1363, 0
    %v1417 = vsel %vm1410, %v1365, 0
    %v1419 = vsel %vm1410, %v1367, 0
    %v1421 = vsel %vm1410, %v1369, 0
    %v1423 = vsel %vm1410, %v1371, 0
    %v1425 = vsel %vm1410, %v1373, 0
    %v1427 = vsel %vm1410, %v1375, 0
    %v1429 = vsel %vm1410, %v1377, 0
    %v1431 = vsel %vm1410, %v1379, 0
    %vm1433 = vcmask 1045504
    %vm1434 = vcmask 1046528
    %v1435 = vsel %vm1433, 4294967295, 65535
    %v1436 = vsel %vm1434, %v1435, 0
    %v1438 = vand.u32 %v1407, %v1436
    %1440 = vmatprep.subr.bf16.mxu0 0
    %1441 = vmatpush1.bf16.msra.mxu0 0
    %1442 = vmatprep.subr.bf16.mxu0 0
    %1443 = vmatpush1.bf16.msra.mxu0 0
    %1444 = vmatprep.subr.bf16.mxu0 0
    %1445 = vmatpush1.bf16.msra.mxu0 0
    %1446 = vmatprep.subr.bf16.mxu0 0
    %1447 = vmatpush1.bf16.msra.mxu0 0
    %1448 = vmatprep.subr.bf16.mxu0 0
    %1449 = vmatpush1.bf16.msra.mxu0 0
    %1450 = vmatprep.subr.bf16.mxu0 0
    %1451 = vmatpush1.bf16.msra.mxu0 %v1438
    %1452 = vmatprep.subr.bf16.mxu0 0
    %1453 = vmatpush1.bf16.msra.mxu0 %v1406
    %1454 = vmatprep.subr.bf16.mxu0 0
    %1455 = vmatpush1.bf16.msra.mxu0 %v1405
    %1456 = vmatprep.subr.bf16.mxu0 0
    %1457 = vmatpush2.bf16.msra.mxu0 0
    %1458 = vmatprep.subr.bf16.mxu0 0
    %1459 = vmatpush2.bf16.msra.mxu0 0
    %1460 = vmatprep.subr.bf16.mxu0 0
    %1461 = vmatpush2.bf16.msra.mxu0 0
    %1462 = vmatprep.subr.bf16.mxu0 0
    %1463 = vmatpush2.bf16.msra.mxu0 0
    %1464 = vmatprep.subr.bf16.mxu0 0
    %1465 = vmatpush2.bf16.msra.mxu0 0
    %1466 = vmatprep.subr.bf16.mxu0 0
    %1467 = vmatpush2.bf16.msra.mxu0 0
    %1468 = vmatprep.subr.bf16.mxu0 0
    %1469 = vmatpush2.bf16.msra.mxu0 0
    %1470 = vmatprep.subr.bf16.mxu0 0
    %1471 = vmatpush2.bf16.msra.mxu0 0
    %1472 = vmatprep.mubr.bf16.mxu0 0
    %1473 = vmatmul.mubr.bf16.gmra.mxu0 %v1411
    %v1474 = vpop.f32.mrf.mxu0
    %v1475 = vadd.f32 %v1391, %v1474
    %v1476 = vpop.f32.mrf.mxu0
    %v1477 = vpop.f32.mrf.mxu0
    %v1478 = vadd.f32 %v1391, %v1477
    %v1479 = vpop.f32.mrf.mxu0
    %1480 = vmatprep.mubr.bf16.mxu0 0
    %1481 = vmatmul.mubr.bf16.gmra.mxu0 %v1413
    %v1482 = vpop.f32.mrf.mxu0
    %v1483 = vadd.f32 %v1391, %v1482
    %v1484 = vpop.f32.mrf.mxu0
    %v1485 = vpop.f32.mrf.mxu0
    %v1486 = vadd.f32 %v1391, %v1485
    %v1487 = vpop.f32.mrf.mxu0
    %1488 = vmatprep.mubr.bf16.mxu0 0
    %1489 = vmatmul.mubr.bf16.gmra.mxu0 %v1415
    %v1490 = vpop.f32.mrf.mxu0
    %v1491 = vadd.f32 %v1391, %v1490
    %v1492 = vpop.f32.mrf.mxu0
    %v1493 = vpop.f32.mrf.mxu0
    %v1494 = vadd.f32 %v1391, %v1493
    %v1495 = vpop.f32.mrf.mxu0
    %1496 = vmatprep.mubr.bf16.mxu0 0
    %1497 = vmatmul.mubr.bf16.gmra.mxu0 %v1417
    %v1498 = vpop.f32.mrf.mxu0
    %v1499 = vadd.f32 %v1391, %v1498
    %v1500 = vpop.f32.mrf.mxu0
    %v1501 = vpop.f32.mrf.mxu0
    %v1502 = vadd.f32 %v1391, %v1501
    %v1503 = vpop.f32.mrf.mxu0
    %1504 = vmatprep.mubr.bf16.mxu0 0
    %1505 = vmatmul.mubr.bf16.gmra.mxu0 %v1419
    %v1506 = vpop.f32.mrf.mxu0
    %v1507 = vadd.f32 %v1391, %v1506
    %v1508 = vpop.f32.mrf.mxu0
    %v1509 = vpop.f32.mrf.mxu0
    %v1510 = vadd.f32 %v1391, %v1509
    %v1511 = vpop.f32.mrf.mxu0
    %1512 = vmatprep.mubr.bf16.mxu0 0
    %1513 = vmatmul.mubr.bf16.gmra.mxu0 %v1421
    %v1514 = vpop.f32.mrf.mxu0
    %v1515 = vadd.f32 %v1391, %v1514
    %v1516 = vpop.f32.mrf.mxu0
    %v1517 = vpop.f32.mrf.mxu0
    %v1518 = vadd.f32 %v1391, %v1517
    %v1519 = vpop.f32.mrf.mxu0
    %1520 = vmatprep.mubr.bf16.mxu0 0
    %1521 = vmatmul.mubr.bf16.gmra.mxu0 %v1423
    %v1522 = vpop.f32.mrf.mxu0
    %v1523 = vadd.f32 %v1391, %v1522
    %v1524 = vpop.f32.mrf.mxu0
    %v1525 = vpop.f32.mrf.mxu0
    %v1526 = vadd.f32 %v1391, %v1525
    %v1527 = vpop.f32.mrf.mxu0
    %1528 = vmatprep.mubr.bf16.mxu0 0
    %1529 = vmatmul.mubr.bf16.gmra.mxu0 %v1425
    %v1530 = vpop.f32.mrf.mxu0
    %v1531 = vadd.f32 %v1391, %v1530
    %v1532 = vpop.f32.mrf.mxu0
    %v1533 = vpop.f32.mrf.mxu0
    %v1534 = vadd.f32 %v1391, %v1533
    %v1535 = vpop.f32.mrf.mxu0
    %1536 = vmatprep.mubr.bf16.mxu0 0
    %1537 = vmatmul.mubr.bf16.gmra.mxu0 %v1427
    %v1538 = vpop.f32.mrf.mxu0
    %v1539 = vadd.f32 %v1391, %v1538
    %v1540 = vpop.f32.mrf.mxu0
    %v1541 = vpop.f32.mrf.mxu0
    %v1542 = vadd.f32 %v1391, %v1541
    %v1543 = vpop.f32.mrf.mxu0
    %1544 = vmatprep.mubr.bf16.mxu0 0
    %1545 = vmatmul.mubr.bf16.gmra.mxu0 %v1429
    %v1546 = vpop.f32.mrf.mxu0
    %v1547 = vadd.f32 %v1391, %v1546
    %v1548 = vpop.f32.mrf.mxu0
    %v1549 = vpop.f32.mrf.mxu0
    %v1550 = vadd.f32 %v1391, %v1549
    %v1551 = vpop.f32.mrf.mxu0
    %1552 = vmatprep.mubr.bf16.mxu0 0
    %1553 = vmatmul.mubr.bf16.gmra.mxu0 %v1431
    %v1554 = vpop.f32.mrf.mxu0
    %v1555 = vadd.f32 %v1391, %v1554
    %v1556 = vpop.f32.mrf.mxu0
    %v1557 = vpop.f32.mrf.mxu0
    %v1558 = vadd.f32 %v1391, %v1557
    %v1559 = vpop.f32.mrf.mxu0
    %1560 = vdwg.mxu0
    %v1561 = vmax.f32 %v1475, 0.0
    %v1562 = vmax.f32 %v1478, 0.0
    %v1563 = vmax.f32 %v1483, 0.0
    %v1564 = vmax.f32 %v1486, 0.0
    %v1565 = vmax.f32 %v1491, 0.0
    %v1566 = vmax.f32 %v1494, 0.0
    %v1567 = vmax.f32 %v1499, 0.0
    %v1568 = vmax.f32 %v1502, 0.0
    %v1569 = vmax.f32 %v1507, 0.0
    %v1570 = vmax.f32 %v1510, 0.0
    %v1571 = vmax.f32 %v1515, 0.0
    %v1572 = vmax.f32 %v1518, 0.0
    %v1573 = vmax.f32 %v1523, 0.0
    %v1574 = vmax.f32 %v1526, 0.0
    %v1575 = vmax.f32 %v1531, 0.0
    %v1576 = vmax.f32 %v1534, 0.0
    %v1577 = vmax.f32 %v1539, 0.0
    %v1578 = vmax.f32 %v1542, 0.0
    %v1579 = vmax.f32 %v1547, 0.0
    %v1580 = vmax.f32 %v1550, 0.0
    %v1581 = vmax.f32 %v1555, 0.0
    %v1582 = vmax.f32 %v1558, 0.0
    %v1583 = vpack.c.bf16 %v1562, %v1561
    %v1584 = vpack.c.bf16 %v1564, %v1563
    %v1585 = vpack.c.bf16 %v1566, %v1565
    %v1586 = vpack.c.bf16 %v1568, %v1567
    %v1587 = vpack.c.bf16 %v1570, %v1569
    %v1588 = vpack.c.bf16 %v1572, %v1571
    %v1589 = vpack.c.bf16 %v1574, %v1573
    %v1590 = vpack.c.bf16 %v1576, %v1575
    %v1591 = vpack.c.bf16 %v1578, %v1577
    %v1592 = vpack.c.bf16 %v1580, %v1579
    %v1593 = vpack.c.bf16 %v1582, %v1581
    %v1605 = vunpack.c.l.b16 %v1583
    %v1606 = vunpack.c.h.b16 %v1583
    %v1607 = vunpack.c.l.b16 %v1584
    %v1608 = vunpack.c.h.b16 %v1584
    %v1609 = vunpack.c.l.b16 %v1585
    %v1610 = vunpack.c.h.b16 %v1585
    %v1611 = vunpack.c.l.b16 %v1586
    %v1612 = vunpack.c.h.b16 %v1586
    %v1613 = vunpack.c.l.b16 %v1587
    %v1614 = vunpack.c.h.b16 %v1587
    %v1615 = vunpack.c.l.b16 %v1588
    %v1616 = vunpack.c.h.b16 %v1588
    %v1617 = vunpack.c.l.b16 %v1589
    %v1618 = vunpack.c.h.b16 %v1589
    %v1619 = vunpack.c.l.b16 %v1590
    %v1620 = vunpack.c.h.b16 %v1590
    %v1621 = vunpack.c.l.b16 %v1591
    %v1622 = vunpack.c.h.b16 %v1591
    %v1623 = vunpack.c.l.b16 %v1592
    %v1624 = vunpack.c.h.b16 %v1592
    %v1625 = vunpack.c.l.b16 %v1593
    %v1626 = vunpack.c.h.b16 %v1593
    %v1627 = vpack.c.b16 %v1605, %v1605
    %v1628 = vpack.c.b16 %v1606, %v1606
    %v1629 = vpack.c.b16 %v1607, %v1607
    %v1630 = vpack.c.b16 %v1608, %v1608
    %v1631 = vpack.c.b16 %v1609, %v1609
    %v1632 = vpack.c.b16 %v1610, %v1610
    %v1633 = vpack.c.b16 %v1611, %v1611
    %v1634 = vpack.c.b16 %v1612, %v1612
    %v1635 = vpack.c.b16 %v1613, %v1613
    %v1636 = vpack.c.b16 %v1614, %v1614
    %v1637 = vpack.c.b16 %v1615, %v1615
    %v1638 = vpack.c.b16 %v1616, %v1616
    %v1639 = vpack.c.b16 %v1617, %v1617
    %v1640 = vpack.c.b16 %v1618, %v1618
    %v1641 = vpack.c.b16 %v1619, %v1619
    %v1642 = vpack.c.b16 %v1620, %v1620
    %v1643 = vpack.c.b16 %v1621, %v1621
    %v1644 = vpack.c.b16 %v1622, %v1622
    %v1645 = vpack.c.b16 %v1623, %v1623
    %v1646 = vpack.c.b16 %v1624, %v1624
    %v1647 = vpack.c.b16 %v1625, %v1625
    %v1648 = vpack.c.b16 %v1626, %v1626
    %1671 = vst [vmem:[#allocation2] sm:$0xf] %v1627
    %1672 = vst [vmem:[#allocation2 + $0x4] sm:$0xf] %v1628
    %1673 = vst [vmem:[#allocation2 + $0x8] sm:$0xf] %v1629
    %1674 = vst [vmem:[#allocation2 + $0xc] sm:$0xf] %v1630
    %1675 = vst [vmem:[#allocation2 + $0x10] sm:$0xf] %v1631
    %1676 = vst [vmem:[#allocation2 + $0x14] sm:$0xf] %v1632
    %1677 = vst [vmem:[#allocation2 + $0x18] sm:$0xf] %v1633
    %1678 = vst [vmem:[#allocation2 + $0x1c] sm:$0xf] %v1634
    %1679 = vst [vmem:[#allocation2 + $0x20] sm:$0xf] %v1635
    %1680 = vst [vmem:[#allocation2 + $0x24] sm:$0xf] %v1636
    %1681 = vst [vmem:[#allocation2 + $0x28] sm:$0xf] %v1637
    %1682 = vst [vmem:[#allocation2 + $0x2c] sm:$0xf] %v1638
    %1683 = vst [vmem:[#allocation2 + $0x30] sm:$0xf] %v1639
    %1684 = vst [vmem:[#allocation2 + $0x34] sm:$0xf] %v1640
    %1685 = vst [vmem:[#allocation2 + $0x38] sm:$0xf] %v1641
    %1686 = vst [vmem:[#allocation2 + $0x3c] sm:$0xf] %v1642
    %1687 = vst [vmem:[#allocation2 + $0x40] sm:$0xf] %v1643
    %1688 = vst [vmem:[#allocation2 + $0x44] sm:$0xf] %v1644
    %1689 = vst [vmem:[#allocation2 + $0x48] sm:$0xf] %v1645
    %1690 = vst [vmem:[#allocation2 + $0x4c] sm:$0xf] %v1646
    %1691 = vst [vmem:[#allocation2 + $0x50] sm:$0xf] %v1647
    %1692 = vst [vmem:[#allocation2 + $0x54] sm:$0xf] %v1648
    // Predicated region
    $region14: #{tpu_custom_call.1} parent=1 // pred_check
      _
    $region15: #{tpu_custom_call.1} parent=1 // pred_check_branch
      %1694 = sbr.rel (0) target = $region17
    $region16: #{tpu_custom_call.1} parent=1 // pred_region
      %s1696 = ssub.s32 1408, 1408
      %1697 = vsyncadd [#allocation3], %s1696
      %s1698 = sshll.u32 [#allocation2], 4
      %s1699 = int_to_ptr.vmem [resolvable:$true] %s1698
      %1704 = dma.vmem_to_hbm [thread:$0]  %s1699, 1408, %s3, [#allocation3], 64, 64, 4
    $region17: #{tpu_custom_call.1} parent=1 // pred_fallthru
      _
    // Predicated region
    $region18: #{tpu_custom_call.1} parent=1 // pred_check
      _
    $region19: #{tpu_custom_call.1} parent=1 // pred_check_branch
      %1706 = sbr.rel (0) target = $region21
    $region20: #{tpu_custom_call.1} parent=1 // pred_region
      %1707 = dma.done [#allocation3], 1408
    $region21: #{tpu_custom_call.1} parent=1 // pred_fallthru
      _
    %1708 = vsyncpa [#allocation3], 1

</llo_original>
